<compile_context>
chip_gen: v7x
topology: tpu7x:2x2x1
jax: 0.10.0
libtpu: 0.0.40
codegen_flags: <defaults>
</compile_context>

<pallas_src>
import functools

import jax
import jax.numpy as jnp
from jax.experimental import pallas as pl
from jax.experimental.pallas import tpu as pltpu

EPS = 1e-5  # torch batch_norm default eps


def _round_up(x, m):
    return (x + m - 1) // m * m


def _vmem_limit_bytes():
    """Generation-aware scoped-VMEM limit (leave headroom for Mosaic temps)."""
    phys = 128 * 1024 * 1024
    try:
        info = pltpu.get_tpu_info()
        phys = int(getattr(info, "vmem_capacity_bytes", phys))
    except Exception:
        pass
    if phys >= 96 * 1024 * 1024:          # v5e / v6e (128 MiB physical)
        return 100 * 1024 * 1024
    return 48 * 1024 * 1024                # v7x (64 MiB physical)


# ----------------------------------------------------------------------------- #
# Fused kernel: one grid step per GIN layer; h carried in VMEM scratch.
# ----------------------------------------------------------------------------- #
def fused_gnn_kernel(a_ref, h0_ref, w1x_ref, eb_ref, w2t_ref, b2_ref,
                     pc_ref, invcnt_ref, wpt_ref, wpb_ref, bp_ref,
                     out_ref, h_scr, *, num_layer, g_pad):
    layer = pl.program_id(0)

    @pl.when(layer == 0)
    def _init():
        h_scr[...] = h0_ref[...]
        out_ref[...] = jnp.zeros_like(out_ref)

    h = h_scr[...]                                           # (Np, Dp) bf16
    # aggregation over incoming edges + self loop:  A @ h  -> MXU (lane-dense K)
    ah = jnp.dot(a_ref[...], h, preferred_element_type=jnp.float32)
    # linear1 (eval-BN folded) on the x-part; edge part + b1 already in EB
    hm = jnp.dot(ah.astype(jnp.bfloat16), w1x_ref[0],
                 preferred_element_type=jnp.float32) + eb_ref[0]
    hm = jnp.maximum(hm, 0.0)                                # ReLU inside MLP
    hn = jnp.dot(hm.astype(jnp.bfloat16), w2t_ref[0],
                 preferred_element_type=jnp.float32) + b2_ref[0]

    # inter-layer ReLU (all but last layer); dropout p=0 -> identity
    @pl.when(layer < num_layer - 1)
    def _carry():
        h_scr[...] = jnp.maximum(hn, 0.0).astype(jnp.bfloat16)

    # prediction head on the last layer: [mean-pool ; center-gather] stacked
    # into one matmul, then split rows; concat removed by splitting w_pred.
    @pl.when(layer == num_layer - 1)
    def _head():
        hb = hn.astype(jnp.bfloat16)
        pc = jnp.dot(pc_ref[...], hb, preferred_element_type=jnp.float32)
        pooled = pc[:g_pad] * invcnt_ref[...]                # exact /count in f32
        center = pc[g_pad:]
        out = (jnp.dot(pooled.astype(jnp.bfloat16), wpt_ref[...],
                       preferred_element_type=jnp.float32)
               + jnp.dot(center.astype(jnp.bfloat16), wpb_ref[...],
                         preferred_element_type=jnp.float32)
               + bp_ref[...])
        out_ref[...] = out


# ----------------------------------------------------------------------------- #
# Full model: glue / folding in plain JAX, hot path in one Pallas kernel.
# ----------------------------------------------------------------------------- #
def gnn_graphpred_forward(x_idx, edge_index, edge_attr, batch, center_node_idx,
                          layer_params, layer_bn_params, head_params,
                          num_graphs):
    N = x_idx.shape[0]
    L = len(layer_params)
    D = layer_params[0]["w2"].shape[0]
    T = head_params["w"].shape[0]
    G = num_graphs

    # --- add self loops (edge_attr col 7 == 1 for loops) ---
    loop = jnp.arange(N, dtype=edge_index.dtype)
    src_full = jnp.concatenate([edge_index[0], loop])
    dst_full = jnp.concatenate([edge_index[1], loop])
    self_loop_attr = jnp.zeros((N, 9), jnp.float32).at[:, 7].set(1.0)
    edge_attr_full = jnp.concatenate([edge_attr.astype(jnp.float32),
                                      self_loop_attr], axis=0)

    # --- dense graph operators (built once, shared by every layer) ---
    # A[n, m] = number of edges m -> n (incl. self loop); exact in bf16 for <=256
    A = jnp.zeros((N, N), jnp.float32).at[dst_full, src_full].add(1.0)
    # S[n] = sum of edge_attr over incoming edges of n ; deg[n] = in-degree
    S = jnp.zeros((N, 9), jnp.float32).at[dst_full].add(edge_attr_full)
    deg = jnp.zeros((N,), jnp.float32).at[dst_full].add(1.0)

    # mean-pool (exact 0/1 one-hot, 1/count applied in-kernel) + center gather
    batch1h = jax.nn.one_hot(batch, G, dtype=jnp.float32).T           # (G, N)
    counts = jnp.maximum(jnp.sum(batch1h, axis=1), 1.0)               # (G,)
    center1h = jax.nn.one_hot(center_node_idx, N, dtype=jnp.float32)  # (G, N)

    # --- layer-0 input embedding lookup (parameter-table gather, glue) ---
    h0 = layer_params[0]["emb"][x_idx.astype(jnp.int32)]              # (N, D)

    # --- per-layer algebraic folding (eval-mode BN into linear1, edge term
    #     + b1 into a per-node bias EB) ---
    W1x_l, EB_l, W2t_l, b2_l = [], [], [], []
    for l in range(L):
        p, bn = layer_params[l], layer_bn_params[l]
        s = p["gamma"] * jax.lax.rsqrt(bn["var"] + EPS)               # (D,)
        w1T = p["w1"].T                                               # (2D, D)
        W1x = w1T[:D] * s[None, :]                                    # x-part
        W1e = w1T[D:] * s[None, :]                                    # edge-part
        b1f = p["b1"] * s + p["beta"] - bn["mean"] * s
        # aggr_edge @ W1e == S @ (we.T @ W1e) + deg[:,None] * (be @ W1e)
        EC = S @ (p["we"].T @ W1e) + deg[:, None] * (p["be"] @ W1e)   # (N, D)
        W1x_l.append(W1x)
        EB_l.append(EC + b1f[None, :])
        W2t_l.append(p["w2"].T)
        b2_l.append(p["b2"])

    # --- pad to TPU-friendly shapes: node dim -> x128 lanes (lane-dense A and
    #     MXU-native K), feature dims -> x128 lanes, graph rows -> x8 ---
    Np, Dp = _round_up(N, 128), _round_up(D, 128)
    Gp, Tp = _round_up(G, 8), _round_up(T, 128)

    def pad2(a, r, c):
        return jnp.pad(a, ((0, r - a.shape[0]), (0, c - a.shape[1])))

    A_p = pad2(A, Np, Np).astype(jnp.bfloat16)
    h0_p = pad2(h0.astype(jnp.float32), Np, Dp).astype(jnp.bfloat16)
    W1x_p = jnp.stack([pad2(w, Dp, Dp) for w in W1x_l]).astype(jnp.bfloat16)
    EB_p = jnp.stack([pad2(e, Np, Dp) for e in EB_l])                 # (L,Np,Dp) f32
    W2t_p = jnp.stack([pad2(w, Dp, Dp) for w in W2t_l]).astype(jnp.bfloat16)
    b2_p = jnp.stack([jnp.pad(b, (0, Dp - D))[None, :] for b in b2_l])  # (L,1,Dp) f32
    pc_p = jnp.concatenate([pad2(batch1h, Gp, Np),
                            pad2(center1h, Gp, Np)], axis=0).astype(jnp.bfloat16)
    invcnt_p = jnp.pad(1.0 / counts, (0, Gp - G))[:, None]            # (Gp,1) f32
    wpT = head_params["w"].T                                          # (2D, T)
    wpt_p = pad2(wpT[:D], Dp, Tp).astype(jnp.bfloat16)
    wpb_p = pad2(wpT[D:], Dp, Tp).astype(jnp.bfloat16)
    bp_p = jnp.pad(head_params["b"], (0, Tp - T))[None, :]            # (1,Tp) f32

    args = (A_p, h0_p, W1x_p, EB_p, W2t_p, b2_p,
            pc_p, invcnt_p, wpt_p, wpb_p, bp_p)

    in_specs = [
        pl.BlockSpec((Np, Np), lambda l: (0, 0)),        # A        (resident)
        pl.BlockSpec((Np, Dp), lambda l: (0, 0)),        # h0       (resident)
        pl.BlockSpec((1, Dp, Dp), lambda l: (l, 0, 0)),  # W1x      (streamed)
        pl.BlockSpec((1, Np, Dp), lambda l: (l, 0, 0)),  # EB       (streamed)
        pl.BlockSpec((1, Dp, Dp), lambda l: (l, 0, 0)),  # W2t      (streamed)
        pl.BlockSpec((1, 1, Dp), lambda l: (l, 0, 0)),   # b2       (streamed)
        pl.BlockSpec((2 * Gp, Np), lambda l: (0, 0)),    # pool+center stacked
        pl.BlockSpec((Gp, 1), lambda l: (0, 0)),         # 1/count
        pl.BlockSpec((Dp, Tp), lambda l: (0, 0)),        # w_pred pooled half
        pl.BlockSpec((Dp, Tp), lambda l: (0, 0)),        # w_pred center half
        pl.BlockSpec((1, Tp), lambda l: (0, 0)),         # head bias
    ]
    out_specs = pl.BlockSpec((Gp, Tp), lambda l: (0, 0))

    flops = int(2 * L * (Np * Np * Dp + 2 * Np * Dp * Dp)
                + 2 * (2 * Gp * Np * Dp + 2 * Gp * Dp * Tp))
    bytes_accessed = int(sum(int(a.size) * a.dtype.itemsize for a in args)
                         + Gp * Tp * 4)

    out = pl.pallas_call(
        functools.partial(fused_gnn_kernel, num_layer=L, g_pad=Gp),
        out_shape=jax.ShapeDtypeStruct((Gp, Tp), jnp.float32),
        grid_spec=pltpu.PrefetchScalarGridSpec(
            num_scalar_prefetch=0,
            grid=(L,),
            in_specs=in_specs,
            out_specs=out_specs,
            scratch_shapes=[pltpu.VMEM((Np, Dp), jnp.bfloat16)],  # carried h
        ),
        compiler_params=pltpu.CompilerParams(
            dimension_semantics=("arbitrary",),
            vmem_limit_bytes=_vmem_limit_bytes()),
        cost_estimate=pl.CostEstimate(flops=flops, transcendentals=0,
                                      bytes_accessed=bytes_accessed),
    )(*args)
    return out[:G, :T]


# ----------------------------------------------------------------------------- #
# Deterministic parameter construction (shapes implied by the torch module)
# ----------------------------------------------------------------------------- #
def init_params(key, num_layer, emb_dim, num_node_types, num_tasks):
    layer_params, layer_bn_params = [], []
    for layer in range(num_layer):
        key, *ks = jax.random.split(key, 10)
        p = {
            "w1":    0.1 * jax.random.normal(ks[0], (emb_dim, 2 * emb_dim), jnp.float32),
            "b1":    0.1 * jax.random.normal(ks[1], (emb_dim,), jnp.float32),
            "gamma": 1.0 + 0.05 * jax.random.normal(ks[2], (emb_dim,), jnp.float32),
            "beta":  0.05 * jax.random.normal(ks[3], (emb_dim,), jnp.float32),
            "w2":    0.1 * jax.random.normal(ks[4], (emb_dim, emb_dim), jnp.float32),
            "b2":    0.1 * jax.random.normal(ks[5], (emb_dim,), jnp.float32),
            "we":    0.1 * jax.random.normal(ks[6], (emb_dim, 9), jnp.float32),
            "be":    0.1 * jax.random.normal(ks[7], (emb_dim,), jnp.float32),
            "emb":   0.1 * jax.random.normal(ks[8], (num_node_types, emb_dim), jnp.float32),
        }
        bn = {
            "mean": 0.1 * jax.random.normal(jax.random.fold_in(key, 100 + layer),
                                            (emb_dim,), jnp.float32),
            "var":  1.0 + 0.1 * jax.random.uniform(jax.random.fold_in(key, 200 + layer),
                                                   (emb_dim,), jnp.float32),
        }
        layer_params.append(p)
        layer_bn_params.append(bn)

    key, kw, kb = jax.random.split(key, 3)
    head_params = {
        "w": 0.1 * jax.random.normal(kw, (num_tasks, 2 * emb_dim), jnp.float32),
        "b": 0.1 * jax.random.normal(kb, (num_tasks,), jnp.float32),
    }
    return layer_params, layer_bn_params, head_params


if __name__ == "__main__":
    key = jax.random.PRNGKey(0)

    num_layer = 2
    emb_dim = 32
    num_node_types = 10
    num_tasks = 4
    N = 12          # nodes
    E = 20          # directed edges (before self loops)
    G = 2           # graphs in batch

    k = jax.random.split(key, 8)
    x_idx = jax.random.randint(k[0], (N,), 0, num_node_types, dtype=jnp.int32)
    src = jax.random.randint(k[1], (E,), 0, N, dtype=jnp.int32)
    dst = jax.random.randint(k[2], (E,), 0, N, dtype=jnp.int32)
    edge_index = jnp.stack([src, dst])                       # (2, E)
    edge_attr = jax.random.normal(k[3], (E, 9), jnp.float32)
    batch = jnp.concatenate([jnp.zeros(N // 2, jnp.int32),
                             jnp.ones(N - N // 2, jnp.int32)])
    center_node_idx = jnp.array([2, 8], jnp.int32)           # one center per graph

    layer_params, layer_bn_params, head_params = init_params(
        k[4], num_layer, emb_dim, num_node_types, num_tasks)

    out = gnn_graphpred_forward(x_idx, edge_index, edge_attr, batch,
                                center_node_idx, layer_params,
                                layer_bn_params, head_params, num_graphs=G)
    out = jax.block_until_ready(out)
    assert out.shape == (G, num_tasks) and out.dtype == jnp.float32
    print("KERNEL_OK")
</pallas_src>

<mosaic_0001>
module attributes {stable_mosaic.version = 11 : i64} {
  func.func @fused_gnn_kernel(%arg0: i32, %arg1: memref<128x128xbf16, #tpu.memory_space<vmem>>, %arg2: memref<128x128xbf16, #tpu.memory_space<vmem>>, %arg3: memref<1x128x128xbf16, #tpu.memory_space<vmem>>, %arg4: memref<1x128x128xf32, #tpu.memory_space<vmem>>, %arg5: memref<1x128x128xbf16, #tpu.memory_space<vmem>>, %arg6: memref<1x1x128xf32, #tpu.memory_space<vmem>>, %arg7: memref<16x128xbf16, #tpu.memory_space<vmem>>, %arg8: memref<8x1xf32, #tpu.memory_space<vmem>>, %arg9: memref<128x128xbf16, #tpu.memory_space<vmem>>, %arg10: memref<128x128xbf16, #tpu.memory_space<vmem>>, %arg11: memref<1x128xf32, #tpu.memory_space<vmem>>, %arg12: memref<8x128xf32, #tpu.memory_space<vmem>>, %arg13: memref<128x128xbf16, #tpu.memory_space<vmem>>) attributes {dimension_semantics = [#tpu.dimension_semantics<arbitrary>], iteration_bounds = array<i64: 2>, scalar_prefetch = 0 : i64, scratch_operands = 1 : i64, tpu.core_type = #tpu.core_type<tc>, window_params = [{pipeline_mode = #tpu.pipeline_mode<synchronous>, transform_indices = @transform_0, window_bounds = array<i64: 128, 128>}, {pipeline_mode = #tpu.pipeline_mode<synchronous>, transform_indices = @transform_1, window_bounds = array<i64: 128, 128>}, {transform_indices = @transform_2, window_bounds = array<i64: 1, 128, 128>}, {transform_indices = @transform_3, window_bounds = array<i64: 1, 128, 128>}, {transform_indices = @transform_4, window_bounds = array<i64: 1, 128, 128>}, {transform_indices = @transform_5, window_bounds = array<i64: 1, 1, 128>}, {pipeline_mode = #tpu.pipeline_mode<synchronous>, transform_indices = @transform_6, window_bounds = array<i64: 16, 128>}, {pipeline_mode = #tpu.pipeline_mode<synchronous>, transform_indices = @transform_7, window_bounds = array<i64: 8, 1>}, {pipeline_mode = #tpu.pipeline_mode<synchronous>, transform_indices = @transform_8, window_bounds = array<i64: 128, 128>}, {pipeline_mode = #tpu.pipeline_mode<synchronous>, transform_indices = @transform_9, window_bounds = array<i64: 128, 128>}, {pipeline_mode = #tpu.pipeline_mode<synchronous>, transform_indices = @transform_10, window_bounds = array<i64: 1, 128>}, {pipeline_mode = #tpu.pipeline_mode<synchronous>, transform_indices = @transform_11, window_bounds = array<i64: 8, 128>}]} {
    %c0_i32 = arith.constant 0 : i32
    %0 = arith.cmpi eq, %arg0, %c0_i32 : i32
    %1 = arith.extui %0 : i1 to i32
    %c0_i32_0 = arith.constant 0 : i32
    %2 = arith.cmpi ne, %1, %c0_i32_0 : i32
    scf.if %2 {
      %c0_22 = arith.constant 0 : index
      %c0_23 = arith.constant 0 : index
      %29 = vector.load %arg2[%c0_22, %c0_23] : memref<128x128xbf16, #tpu.memory_space<vmem>>, vector<128x128xbf16>
      %c0_24 = arith.constant 0 : index
      %c0_25 = arith.constant 0 : index
      %30 = vector.load %arg13[%c0_24, %c0_25] : memref<128x128xbf16, #tpu.memory_space<vmem>>, vector<128x128xbf16>
      tpu.vector_store %arg13[%c0_24, %c0_25], %29 {strides = array<i32>} : memref<128x128xbf16, #tpu.memory_space<vmem>>, vector<128x128xbf16>,
      %cst_26 = arith.constant 0.000000e+00 : f32
      %31 = vector.broadcast %cst_26 : f32 to vector<8x128xf32>
      %c0_27 = arith.constant 0 : index
      %c0_28 = arith.constant 0 : index
      %32 = vector.load %arg12[%c0_27, %c0_28] : memref<8x128xf32, #tpu.memory_space<vmem>>, vector<8x128xf32>
      tpu.vector_store %arg12[%c0_27, %c0_28], %31 {strides = array<i32>} : memref<8x128xf32, #tpu.memory_space<vmem>>, vector<8x128xf32>,
    } else {
    }
    %c0 = arith.constant 0 : index
    %c0_1 = arith.constant 0 : index
    %3 = vector.load %arg13[%c0, %c0_1] : memref<128x128xbf16, #tpu.memory_space<vmem>>, vector<128x128xbf16>
    %c0_2 = arith.constant 0 : index
    %c0_3 = arith.constant 0 : index
    %4 = vector.load %arg1[%c0_2, %c0_3] : memref<128x128xbf16, #tpu.memory_space<vmem>>, vector<128x128xbf16>
    %cst = arith.constant dense<0.000000e+00> : vector<128x128xf32>
    %5 = tpu.matmul %4, %3, %cst {dimension_numbers = #tpu.dot_dimension_numbers<[1], [0], [0], [1], [0, 0, 1, 1], [], []>} : vector<128x128xbf16>, vector<128x128xbf16>, vector<128x128xf32> -> vector<128x128xf32>
    %6 = arith.truncf %5 : vector<128x128xf32> to vector<128x128xbf16>
    %c0_4 = arith.constant 0 : index
    %c0_5 = arith.constant 0 : index
    %c0_6 = arith.constant 0 : index
    %7 = vector.load %arg3[%c0_4, %c0_5, %c0_6] : memref<1x128x128xbf16, #tpu.memory_space<vmem>>, vector<1x128x128xbf16>
    %8 = vector.shape_cast %7 : vector<1x128x128xbf16> to vector<128x128xbf16>
    %cst_7 = arith.constant dense<0.000000e+00> : vector<128x128xf32>
    %9 = tpu.matmul %6, %8, %cst_7 {dimension_numbers = #tpu.dot_dimension_numbers<[1], [0], [0], [1], [0, 0, 1, 1], [], []>} : vector<128x128xbf16>, vector<128x128xbf16>, vector<128x128xf32> -> vector<128x128xf32>
    %c0_8 = arith.constant 0 : index
    %c0_9 = arith.constant 0 : index
    %c0_10 = arith.constant 0 : index
    %10 = vector.load %arg4[%c0_8, %c0_9, %c0_10] : memref<1x128x128xf32, #tpu.memory_space<vmem>>, vector<1x128x128xf32>
    %11 = vector.shape_cast %10 : vector<1x128x128xf32> to vector<128x128xf32>
    %12 = arith.addf %9, %11 : vector<128x128xf32>
    %cst_11 = arith.constant 0.000000e+00 : f32
    %13 = vector.broadcast %cst_11 : f32 to vector<128x128xf32>
    %14 = arith.maximumf %12, %13 : vector<128x128xf32>
    %15 = arith.truncf %14 : vector<128x128xf32> to vector<128x128xbf16>
    %c0_12 = arith.constant 0 : index
    %c0_13 = arith.constant 0 : index
    %c0_14 = arith.constant 0 : index
    %16 = vector.load %arg5[%c0_12, %c0_13, %c0_14] : memref<1x128x128xbf16, #tpu.memory_space<vmem>>, vector<1x128x128xbf16>
    %17 = vector.shape_cast %16 : vector<1x128x128xbf16> to vector<128x128xbf16>
    %cst_15 = arith.constant dense<0.000000e+00> : vector<128x128xf32>
    %18 = tpu.matmul %15, %17, %cst_15 {dimension_numbers = #tpu.dot_dimension_numbers<[1], [0], [0], [1], [0, 0, 1, 1], [], []>} : vector<128x128xbf16>, vector<128x128xbf16>, vector<128x128xf32> -> vector<128x128xf32>
    %c0_16 = arith.constant 0 : index
    %c0_17 = arith.constant 0 : index
    %c0_18 = arith.constant 0 : index
    %19 = vector.load %arg6[%c0_16, %c0_17, %c0_18] : memref<1x1x128xf32, #tpu.memory_space<vmem>>, vector<1x1x128xf32>
    %20 = vector.shape_cast %19 : vector<1x1x128xf32> to vector<1x128xf32>
    %21 = vector.broadcast %20 : vector<1x128xf32> to vector<128x128xf32>
    %22 = arith.addf %18, %21 : vector<128x128xf32>
    %c1_i32 = arith.constant 1 : i32
    %23 = arith.cmpi slt, %arg0, %c1_i32 : i32
    %24 = arith.extui %23 : i1 to i32
    %c0_i32_19 = arith.constant 0 : i32
    %25 = arith.cmpi ne, %24, %c0_i32_19 : i32
    scf.if %25 {
      %cst_22 = arith.constant 0.000000e+00 : f32
      %29 = vector.broadcast %cst_22 : f32 to vector<128x128xf32>
      %30 = arith.maximumf %22, %29 : vector<128x128xf32>
      %31 = arith.truncf %30 : vector<128x128xf32> to vector<128x128xbf16>
      %c0_23 = arith.constant 0 : index
      %c0_24 = arith.constant 0 : index
      %32 = vector.load %arg13[%c0_23, %c0_24] : memref<128x128xbf16, #tpu.memory_space<vmem>>, vector<128x128xbf16>
      tpu.vector_store %arg13[%c0_23, %c0_24], %31 {strides = array<i32>} : memref<128x128xbf16, #tpu.memory_space<vmem>>, vector<128x128xbf16>,
    } else {
    }
    %c1_i32_20 = arith.constant 1 : i32
    %26 = arith.cmpi eq, %arg0, %c1_i32_20 : i32
    %27 = arith.extui %26 : i1 to i32
    %c0_i32_21 = arith.constant 0 : i32
    %28 = arith.cmpi ne, %27, %c0_i32_21 : i32
    scf.if %28 {
      %29 = arith.truncf %22 : vector<128x128xf32> to vector<128x128xbf16>
      %c0_22 = arith.constant 0 : index
      %c0_23 = arith.constant 0 : index
      %30 = vector.load %arg7[%c0_22, %c0_23] : memref<16x128xbf16, #tpu.memory_space<vmem>>, vector<16x128xbf16>
      %cst_24 = arith.constant dense<0.000000e+00> : vector<16x128xf32>
      %31 = tpu.matmul %30, %29, %cst_24 {dimension_numbers = #tpu.dot_dimension_numbers<[1], [0], [0], [1], [0, 0, 1, 1], [], []>} : vector<16x128xbf16>, vector<128x128xbf16>, vector<16x128xf32> -> vector<16x128xf32>
      %32 = vector.extract_strided_slice %31 {offsets = [0, 0], sizes = [8, 128], strides = [1, 1]} : vector<16x128xf32> to vector<8x128xf32>
      %c0_25 = arith.constant 0 : index
      %c0_26 = arith.constant 0 : index
      %33 = vector.load %arg8[%c0_25, %c0_26] : memref<8x1xf32, #tpu.memory_space<vmem>>, vector<8x1xf32>
      %34 = vector.broadcast %33 : vector<8x1xf32> to vector<8x128xf32>
      %35 = arith.mulf %32, %34 : vector<8x128xf32>
      %36 = vector.extract_strided_slice %31 {offsets = [8, 0], sizes = [8, 128], strides = [1, 1]} : vector<16x128xf32> to vector<8x128xf32>
      %37 = arith.truncf %35 : vector<8x128xf32> to vector<8x128xbf16>
      %c0_27 = arith.constant 0 : index
      %c0_28 = arith.constant 0 : index
      %38 = vector.load %arg9[%c0_27, %c0_28] : memref<128x128xbf16, #tpu.memory_space<vmem>>, vector<128x128xbf16>
      %cst_29 = arith.constant dense<0.000000e+00> : vector<8x128xf32>
      %39 = tpu.matmul %37, %38, %cst_29 {dimension_numbers = #tpu.dot_dimension_numbers<[1], [0], [0], [1], [0, 0, 1, 1], [], []>} : vector<8x128xbf16>, vector<128x128xbf16>, vector<8x128xf32> -> vector<8x128xf32>
      %40 = arith.truncf %36 : vector<8x128xf32> to vector<8x128xbf16>
      %c0_30 = arith.constant 0 : index
      %c0_31 = arith.constant 0 : index
      %41 = vector.load %arg10[%c0_30, %c0_31] : memref<128x128xbf16, #tpu.memory_space<vmem>>, vector<128x128xbf16>
      %cst_32 = arith.constant dense<0.000000e+00> : vector<8x128xf32>
      %42 = tpu.matmul %40, %41, %cst_32 {dimension_numbers = #tpu.dot_dimension_numbers<[1], [0], [0], [1], [0, 0, 1, 1], [], []>} : vector<8x128xbf16>, vector<128x128xbf16>, vector<8x128xf32> -> vector<8x128xf32>
      %43 = arith.addf %39, %42 : vector<8x128xf32>
      %c0_33 = arith.constant 0 : index
      %c0_34 = arith.constant 0 : index
      %44 = vector.load %arg11[%c0_33, %c0_34] : memref<1x128xf32, #tpu.memory_space<vmem>>, vector<1x128xf32>
      %45 = vector.broadcast %44 : vector<1x128xf32> to vector<8x128xf32>
      %46 = arith.addf %43, %45 : vector<8x128xf32>
      %c0_35 = arith.constant 0 : index
      %c0_36 = arith.constant 0 : index
      %47 = vector.load %arg12[%c0_35, %c0_36] : memref<8x128xf32, #tpu.memory_space<vmem>>, vector<8x128xf32>
      tpu.vector_store %arg12[%c0_35, %c0_36], %46 {strides = array<i32>} : memref<8x128xf32, #tpu.memory_space<vmem>>, vector<8x128xf32>,
    } else {
    }
    return
  }
  func.func @transform_0(%arg0: i32) -> (i32, i32) {
    %c0_i32 = arith.constant 0 : i32
    %c0_i32_0 = arith.constant 0 : i32
    %c0_i32_1 = arith.constant 0 : i32
    return %c0_i32, %c0_i32_0 : i32, i32
  }
  func.func @transform_1(%arg0: i32) -> (i32, i32) {
    %c0_i32 = arith.constant 0 : i32
    %c0_i32_0 = arith.constant 0 : i32
    %c0_i32_1 = arith.constant 0 : i32
    return %c0_i32, %c0_i32_0 : i32, i32
  }
  func.func @transform_2(%arg0: i32) -> (i32, i32, i32) {
    %c0_i32 = arith.constant 0 : i32
    %c0_i32_0 = arith.constant 0 : i32
    %c0_i32_1 = arith.constant 0 : i32
    return %arg0, %c0_i32, %c0_i32_0 : i32, i32, i32
  }
  func.func @transform_3(%arg0: i32) -> (i32, i32, i32) {
    %c0_i32 = arith.constant 0 : i32
    %c0_i32_0 = arith.constant 0 : i32
    %c0_i32_1 = arith.constant 0 : i32
    return %arg0, %c0_i32, %c0_i32_0 : i32, i32, i32
  }
  func.func @transform_4(%arg0: i32) -> (i32, i32, i32) {
    %c0_i32 = arith.constant 0 : i32
    %c0_i32_0 = arith.constant 0 : i32
    %c0_i32_1 = arith.constant 0 : i32
    return %arg0, %c0_i32, %c0_i32_0 : i32, i32, i32
  }
  func.func @transform_5(%arg0: i32) -> (i32, i32, i32) {
    %c0_i32 = arith.constant 0 : i32
    %c0_i32_0 = arith.constant 0 : i32
    %c0_i32_1 = arith.constant 0 : i32
    return %arg0, %c0_i32, %c0_i32_0 : i32, i32, i32
  }
  func.func @transform_6(%arg0: i32) -> (i32, i32) {
    %c0_i32 = arith.constant 0 : i32
    %c0_i32_0 = arith.constant 0 : i32
    %c0_i32_1 = arith.constant 0 : i32
    return %c0_i32, %c0_i32_0 : i32, i32
  }
  func.func @transform_7(%arg0: i32) -> (i32, i32) {
    %c0_i32 = arith.constant 0 : i32
    %c0_i32_0 = arith.constant 0 : i32
    %c0_i32_1 = arith.constant 0 : i32
    return %c0_i32, %c0_i32_0 : i32, i32
  }
  func.func @transform_8(%arg0: i32) -> (i32, i32) {
    %c0_i32 = arith.constant 0 : i32
    %c0_i32_0 = arith.constant 0 : i32
    %c0_i32_1 = arith.constant 0 : i32
    return %c0_i32, %c0_i32_0 : i32, i32
  }
  func.func @transform_9(%arg0: i32) -> (i32, i32) {
    %c0_i32 = arith.constant 0 : i32
    %c0_i32_0 = arith.constant 0 : i32
    %c0_i32_1 = arith.constant 0 : i32
    return %c0_i32, %c0_i32_0 : i32, i32
  }
  func.func @transform_10(%arg0: i32) -> (i32, i32) {
    %c0_i32 = arith.constant 0 : i32
    %c0_i32_0 = arith.constant 0 : i32
    %c0_i32_1 = arith.constant 0 : i32
    return %c0_i32, %c0_i32_0 : i32, i32
  }
  func.func @transform_11(%arg0: i32) -> (i32, i32) {
    %c0_i32 = arith.constant 0 : i32
    %c0_i32_0 = arith.constant 0 : i32
    %c0_i32_1 = arith.constant 0 : i32
    return %c0_i32, %c0_i32_0 : i32, i32
  }
}

</mosaic_0001>

<llo_original>
// kernel: tpu_custom_call.1
$region0: #{tpu_custom_call.1}
  #allocation0 [shape = 'u32[]', space=smem, size = 0x4, offset = 0x4, fixed_abs, tag = 'smem constant byte address 0x4 - core index']
  #allocation1 [shape = 'u32[144,128]{1,0:T(1,128)}', space=vmem, size = 0x12000, scoped, tag = 'internal scratch']
  #allocation2 [shape = 'bf16[128,128]{1,0:T(16,128)(2,1)}', space=vmem, size = 0x8000, scoped, tag = 'scratch operand']
  %s0 = inlined_call_operand.hbm [shape: bf16[128,128], index: 0, kind: input, shape index: {}]
  %s1 = inlined_call_operand.hbm [shape: bf16[128,128], index: 1, kind: input, shape index: {}]
  %s2 = inlined_call_operand.hbm [shape: bf16[2,128,128], index: 2, kind: input, shape index: {}]
  %s3 = inlined_call_operand.hbm [shape: f32[2,128,128], index: 3, kind: input, shape index: {}]
  %s4 = inlined_call_operand.hbm [shape: bf16[2,128,128], index: 4, kind: input, shape index: {}]
  %s5 = inlined_call_operand.hbm [shape: f32[2,1,128], index: 5, kind: input, shape index: {}]
  %s6 = inlined_call_operand.hbm [shape: bf16[16,128], index: 6, kind: input, shape index: {}]
  %s7 = inlined_call_operand.hbm [shape: f32[8,1], index: 7, kind: input, shape index: {}]
  %s8 = inlined_call_operand.hbm [shape: bf16[128,128], index: 8, kind: input, shape index: {}]
  %s9 = inlined_call_operand.hbm [shape: bf16[128,128], index: 9, kind: input, shape index: {}]
  %s10 = inlined_call_operand.hbm [shape: f32[1,128], index: 10, kind: input, shape index: {}]
  %s11 = inlined_call_operand.hbm [shape: f32[8,128], index: 11, kind: output, shape index: {}]
  %s12 = sld [smem:[#allocation0]]
  $region133: #{tpu_custom_call.1} parent=0
    _
  %s14 = ssub.s32 1, %s12
  %s15 = scalar_select 0, %s14, %s12
  $region1: #{tpu_custom_call.1} parent=0
    #allocation3 [shape = 'u8[32768]{0}', space=vmem, size = 0x8000, scoped, tag = 'input window, operand 0, single buffered']
    #allocation4 [shape = 's32[2]{0}', space=sflag, size = 0x8, scoped, tag = 'scoped memory for tpu_custom_call.1']
    #allocation5 [shape = 's32[2]{0}', space=sflag, size = 0x8, scoped, tag = 'scoped memory for tpu_custom_call.1']
    #allocation6 [shape = 'u8[32768]{0}', space=vmem, size = 0x8000, scoped, tag = 'input window, operand 1, single buffered']
    #allocation7 [shape = 's32[1]{0}', space=sflag, size = 0x4, scoped, tag = 'scoped memory for tpu_custom_call.1']
    #allocation8 [shape = 'u8[65536]{0}', space=vmem, size = 0x10000, scoped, tag = 'input window, operand 2']
    #allocation9 [shape = 'u8[131072]{0}', space=vmem, size = 0x20000, scoped, tag = 'input window, operand 3']
    #allocation10 [shape = 'u8[65536]{0}', space=vmem, size = 0x10000, scoped, tag = 'input window, operand 4']
    #allocation11 [shape = 'u8[1024]{0}', space=vmem, size = 0x400, scoped, tag = 'input window, operand 5']
    #allocation12 [shape = 'u8[4096]{0}', space=vmem, size = 0x1000, scoped, tag = 'input window, operand 6, single buffered']
    #allocation13 [shape = 'u8[4096]{0}', space=vmem, size = 0x1000, scoped, tag = 'input window, operand 7, single buffered']
    #allocation14 [shape = 's32[1]{0}', space=sflag, size = 0x4, scoped, tag = 'scoped memory for tpu_custom_call.1']
    #allocation15 [shape = 'u8[32768]{0}', space=vmem, size = 0x8000, scoped, tag = 'input window, operand 8, single buffered']
    #allocation16 [shape = 'u8[32768]{0}', space=vmem, size = 0x8000, scoped, tag = 'input window, operand 9, single buffered']
    #allocation17 [shape = 's32[1]{0}', space=sflag, size = 0x4, scoped, tag = 'scoped memory for tpu_custom_call.1']
    #allocation18 [shape = 'u8[512]{0}', space=vmem, size = 0x400, scoped, tag = 'input window, operand 10, single buffered']
    #allocation19 [shape = 'u8[4096]{0}', space=vmem, size = 0x1000, scoped, tag = 'output window, operand 0, single buffered']
    %16 = vsyncpa [#allocation4], 0
    %17 = vsyncpa [#allocation7], 0
    %18 = vsyncpa [#allocation14], 0
    %19 = vsyncpa [#allocation17], 0
    %20 = vsyncpa [#allocation5], 0
    loop: start=0, step=1, limit=4
    $region2: #{tpu_custom_call.1} parent=1 // loop_pre_header
      _
    $region3: #{tpu_custom_call.1} parent=1 // loop_header
      %s22 = sphi 0, %s26
      %p23 = scmp.ge.s32.totalorder %s22, 4
      %s30 = sphi 0, %s30
      %s32 = sphi 0, %s30
      %s33 = sphi 0, %s32
      %s47 = sphi 0, %s33
      %s51 = sphi 0, %s51
      %s53 = sphi 0, %s51
      %s54 = sphi 0, %s53
      %s68 = sphi 0, %s54
      %s74 = sphi 0, %s76
      %s77 = sphi 0, %s74
      %s78 = sphi 0, %s77
      %s94 = sphi 0, %s78
      %s100 = sphi 0, %s102
      %s103 = sphi 0, %s100
      %s104 = sphi 0, %s103
      %s120 = sphi 0, %s104
      %s126 = sphi 0, %s128
      %s129 = sphi 0, %s126
      %s130 = sphi 0, %s129
      %s146 = sphi 0, %s130
      %s152 = sphi 0, %s154
      %s155 = sphi 0, %s152
      %s156 = sphi 0, %s155
      %s172 = sphi 0, %s156
      %s176 = sphi 0, %s176
      %s178 = sphi 0, %s176
      %s179 = sphi 0, %s178
      %s193 = sphi 0, %s179
      %s197 = sphi 0, %s197
      %s199 = sphi 0, %s197
      %s200 = sphi 0, %s199
      %s214 = sphi 0, %s200
      %s218 = sphi 0, %s218
      %s220 = sphi 0, %s218
      %s221 = sphi 0, %s220
      %s235 = sphi 0, %s221
      %s239 = sphi 0, %s239
      %s241 = sphi 0, %s239
      %s242 = sphi 0, %s241
      %s256 = sphi 0, %s242
      %s260 = sphi 0, %s260
      %s262 = sphi 0, %s260
      %s263 = sphi 0, %s262
      %s277 = sphi 0, %s263
      %s281 = sphi 0, %s281
      %s283 = sphi 0, %s281
      %s284 = sphi 0, %s283
      %s298 = sphi 0, %s284
    $region4: #{tpu_custom_call.1} parent=1 // loop_header_branch
      %25 = sbr.rel (%p23) target = $region8
    $region5: #{tpu_custom_call.1} parent=1 // loop_body
      %s27 = ssub.s32 %s22, 1
      %s28 = ssub.s32 %s22, 2
      %s29 = sadd.s32 %s22, 1
      %s31 = sadd.s32 %s30, 1
      %p34 = scmp.eq.s32.totalorder %s22, 1
      %p35 = scmp.ne.s32.totalorder %s30, %s32
      %p36 = scmp.eq.s32.totalorder %s22, 0
      %p37 = por %p35, %p36
      %p38 = scmp.ne.s32.totalorder %s30, %s32
      %p39 = scmp.eq.s32.totalorder %s27, 1
      %p40 = por %p38, %p39
      %p41 = scmp.ne.s32.totalorder %s32, %s33
      %p42 = scmp.eq.s32.totalorder %s27, 0
      %p43 = por %p41, %p42
      %p44 = scmp.ne.s32.totalorder %s32, %s33
      %p45 = scmp.eq.s32.totalorder %s28, 1
      %p46 = por %p44, %p45
      %p48 = scmp.ne.s32.totalorder %s33, %s47
      %p49 = scmp.eq.s32.totalorder %s28, 0
      %p50 = por %p48, %p49
      %s52 = sadd.s32 %s51, 1
      %p55 = scmp.eq.s32.totalorder %s22, 1
      %p56 = scmp.ne.s32.totalorder %s51, %s53
      %p57 = scmp.eq.s32.totalorder %s22, 0
      %p58 = por %p56, %p57
      %p59 = scmp.ne.s32.totalorder %s51, %s53
      %p60 = scmp.eq.s32.totalorder %s27, 1
      %p61 = por %p59, %p60
      %p62 = scmp.ne.s32.totalorder %s53, %s54
      %p63 = scmp.eq.s32.totalorder %s27, 0
      %p64 = por %p62, %p63
      %p65 = scmp.ne.s32.totalorder %s53, %s54
      %p66 = scmp.eq.s32.totalorder %s28, 1
      %p67 = por %p65, %p66
      %p69 = scmp.ne.s32.totalorder %s54, %s68
      %p70 = scmp.eq.s32.totalorder %s28, 0
      %p71 = por %p69, %p70
      %s72 = ssub.s32 %s22, %s29
      %p73 = scmp.eq.s32.totalorder %s72, 0
      %s75 = sadd.s32 %s74, 1
      %s76 = scalar_select %p73, %s74, %s75
      %p79 = pneg %p73
      %p80 = scmp.eq.s32.totalorder %s22, 1
      %p81 = por %p79, %p80
      %p82 = scmp.ne.s32.totalorder %s74, %s77
      %p83 = scmp.eq.s32.totalorder %s22, 0
      %p84 = por %p82, %p83
      %p85 = scmp.ne.s32.totalorder %s74, %s77
      %p86 = scmp.eq.s32.totalorder %s27, 1
      %p87 = por %p85, %p86
      %p88 = scmp.ne.s32.totalorder %s77, %s78
      %p89 = scmp.eq.s32.totalorder %s27, 0
      %p90 = por %p88, %p89
      %p91 = scmp.ne.s32.totalorder %s77, %s78
      %p92 = scmp.eq.s32.totalorder %s28, 1
      %p93 = por %p91, %p92
      %p95 = scmp.ne.s32.totalorder %s78, %s94
      %p96 = scmp.eq.s32.totalorder %s28, 0
      %p97 = por %p95, %p96
      %s98 = ssub.s32 %s22, %s29
      %p99 = scmp.eq.s32.totalorder %s98, 0
      %s101 = sadd.s32 %s100, 1
      %s102 = scalar_select %p99, %s100, %s101
      %p105 = pneg %p99
      %p106 = scmp.eq.s32.totalorder %s22, 1
      %p107 = por %p105, %p106
      %p108 = scmp.ne.s32.totalorder %s100, %s103
      %p109 = scmp.eq.s32.totalorder %s22, 0
      %p110 = por %p108, %p109
      %p111 = scmp.ne.s32.totalorder %s100, %s103
      %p112 = scmp.eq.s32.totalorder %s27, 1
      %p113 = por %p111, %p112
      %p114 = scmp.ne.s32.totalorder %s103, %s104
      %p115 = scmp.eq.s32.totalorder %s27, 0
      %p116 = por %p114, %p115
      %p117 = scmp.ne.s32.totalorder %s103, %s104
      %p118 = scmp.eq.s32.totalorder %s28, 1
      %p119 = por %p117, %p118
      %p121 = scmp.ne.s32.totalorder %s104, %s120
      %p122 = scmp.eq.s32.totalorder %s28, 0
      %p123 = por %p121, %p122
      %s124 = ssub.s32 %s22, %s29
      %p125 = scmp.eq.s32.totalorder %s124, 0
      %s127 = sadd.s32 %s126, 1
      %s128 = scalar_select %p125, %s126, %s127
      %p131 = pneg %p125
      %p132 = scmp.eq.s32.totalorder %s22, 1
      %p133 = por %p131, %p132
      %p134 = scmp.ne.s32.totalorder %s126, %s129
      %p135 = scmp.eq.s32.totalorder %s22, 0
      %p136 = por %p134, %p135
      %p137 = scmp.ne.s32.totalorder %s126, %s129
      %p138 = scmp.eq.s32.totalorder %s27, 1
      %p139 = por %p137, %p138
      %p140 = scmp.ne.s32.totalorder %s129, %s130
      %p141 = scmp.eq.s32.totalorder %s27, 0
      %p142 = por %p140, %p141
      %p143 = scmp.ne.s32.totalorder %s129, %s130
      %p144 = scmp.eq.s32.totalorder %s28, 1
      %p145 = por %p143, %p144
      %p147 = scmp.ne.s32.totalorder %s130, %s146
      %p148 = scmp.eq.s32.totalorder %s28, 0
      %p149 = por %p147, %p148
      %s150 = ssub.s32 %s22, %s29
      %p151 = scmp.eq.s32.totalorder %s150, 0
      %s153 = sadd.s32 %s152, 1
      %s154 = scalar_select %p151, %s152, %s153
      %p157 = pneg %p151
      %p158 = scmp.eq.s32.totalorder %s22, 1
      %p159 = por %p157, %p158
      %p160 = scmp.ne.s32.totalorder %s152, %s155
      %p161 = scmp.eq.s32.totalorder %s22, 0
      %p162 = por %p160, %p161
      %p163 = scmp.ne.s32.totalorder %s152, %s155
      %p164 = scmp.eq.s32.totalorder %s27, 1
      %p165 = por %p163, %p164
      %p166 = scmp.ne.s32.totalorder %s155, %s156
      %p167 = scmp.eq.s32.totalorder %s27, 0
      %p168 = por %p166, %p167
      %p169 = scmp.ne.s32.totalorder %s155, %s156
      %p170 = scmp.eq.s32.totalorder %s28, 1
      %p171 = por %p169, %p170
      %p173 = scmp.ne.s32.totalorder %s156, %s172
      %p174 = scmp.eq.s32.totalorder %s28, 0
      %p175 = por %p173, %p174
      %s177 = sadd.s32 %s176, 1
      %p180 = scmp.eq.s32.totalorder %s22, 1
      %p181 = scmp.ne.s32.totalorder %s176, %s178
      %p182 = scmp.eq.s32.totalorder %s22, 0
      %p183 = por %p181, %p182
      %p184 = scmp.ne.s32.totalorder %s176, %s178
      %p185 = scmp.eq.s32.totalorder %s27, 1
      %p186 = por %p184, %p185
      %p187 = scmp.ne.s32.totalorder %s178, %s179
      %p188 = scmp.eq.s32.totalorder %s27, 0
      %p189 = por %p187, %p188
      %p190 = scmp.ne.s32.totalorder %s178, %s179
      %p191 = scmp.eq.s32.totalorder %s28, 1
      %p192 = por %p190, %p191
      %p194 = scmp.ne.s32.totalorder %s179, %s193
      %p195 = scmp.eq.s32.totalorder %s28, 0
      %p196 = por %p194, %p195
      %s198 = sadd.s32 %s197, 1
      %p201 = scmp.eq.s32.totalorder %s22, 1
      %p202 = scmp.ne.s32.totalorder %s197, %s199
      %p203 = scmp.eq.s32.totalorder %s22, 0
      %p204 = por %p202, %p203
      %p205 = scmp.ne.s32.totalorder %s197, %s199
      %p206 = scmp.eq.s32.totalorder %s27, 1
      %p207 = por %p205, %p206
      %p208 = scmp.ne.s32.totalorder %s199, %s200
      %p209 = scmp.eq.s32.totalorder %s27, 0
      %p210 = por %p208, %p209
      %p211 = scmp.ne.s32.totalorder %s199, %s200
      %p212 = scmp.eq.s32.totalorder %s28, 1
      %p213 = por %p211, %p212
      %p215 = scmp.ne.s32.totalorder %s200, %s214
      %p216 = scmp.eq.s32.totalorder %s28, 0
      %p217 = por %p215, %p216
      %s219 = sadd.s32 %s218, 1
      %p222 = scmp.eq.s32.totalorder %s22, 1
      %p223 = scmp.ne.s32.totalorder %s218, %s220
      %p224 = scmp.eq.s32.totalorder %s22, 0
      %p225 = por %p223, %p224
      %p226 = scmp.ne.s32.totalorder %s218, %s220
      %p227 = scmp.eq.s32.totalorder %s27, 1
      %p228 = por %p226, %p227
      %p229 = scmp.ne.s32.totalorder %s220, %s221
      %p230 = scmp.eq.s32.totalorder %s27, 0
      %p231 = por %p229, %p230
      %p232 = scmp.ne.s32.totalorder %s220, %s221
      %p233 = scmp.eq.s32.totalorder %s28, 1
      %p234 = por %p232, %p233
      %p236 = scmp.ne.s32.totalorder %s221, %s235
      %p237 = scmp.eq.s32.totalorder %s28, 0
      %p238 = por %p236, %p237
      %s240 = sadd.s32 %s239, 1
      %p243 = scmp.eq.s32.totalorder %s22, 1
      %p244 = scmp.ne.s32.totalorder %s239, %s241
      %p245 = scmp.eq.s32.totalorder %s22, 0
      %p246 = por %p244, %p245
      %p247 = scmp.ne.s32.totalorder %s239, %s241
      %p248 = scmp.eq.s32.totalorder %s27, 1
      %p249 = por %p247, %p248
      %p250 = scmp.ne.s32.totalorder %s241, %s242
      %p251 = scmp.eq.s32.totalorder %s27, 0
      %p252 = por %p250, %p251
      %p253 = scmp.ne.s32.totalorder %s241, %s242
      %p254 = scmp.eq.s32.totalorder %s28, 1
      %p255 = por %p253, %p254
      %p257 = scmp.ne.s32.totalorder %s242, %s256
      %p258 = scmp.eq.s32.totalorder %s28, 0
      %p259 = por %p257, %p258
      %s261 = sadd.s32 %s260, 1
      %p264 = scmp.eq.s32.totalorder %s22, 1
      %p265 = scmp.ne.s32.totalorder %s260, %s262
      %p266 = scmp.eq.s32.totalorder %s22, 0
      %p267 = por %p265, %p266
      %p268 = scmp.ne.s32.totalorder %s260, %s262
      %p269 = scmp.eq.s32.totalorder %s27, 1
      %p270 = por %p268, %p269
      %p271 = scmp.ne.s32.totalorder %s262, %s263
      %p272 = scmp.eq.s32.totalorder %s27, 0
      %p273 = por %p271, %p272
      %p274 = scmp.ne.s32.totalorder %s262, %s263
      %p275 = scmp.eq.s32.totalorder %s28, 1
      %p276 = por %p274, %p275
      %p278 = scmp.ne.s32.totalorder %s263, %s277
      %p279 = scmp.eq.s32.totalorder %s28, 0
      %p280 = por %p278, %p279
      %s282 = sadd.s32 %s281, 1
      %p285 = scmp.eq.s32.totalorder %s22, 1
      %p286 = scmp.ne.s32.totalorder %s281, %s283
      %p287 = scmp.eq.s32.totalorder %s22, 0
      %p288 = por %p286, %p287
      %p289 = scmp.ne.s32.totalorder %s281, %s283
      %p290 = scmp.eq.s32.totalorder %s27, 1
      %p291 = por %p289, %p290
      %p292 = scmp.ne.s32.totalorder %s283, %s284
      %p293 = scmp.eq.s32.totalorder %s27, 0
      %p294 = por %p292, %p293
      %p295 = scmp.ne.s32.totalorder %s283, %s284
      %p296 = scmp.eq.s32.totalorder %s28, 1
      %p297 = por %p295, %p296
      %p299 = scmp.ne.s32.totalorder %s284, %s298
      %p300 = scmp.eq.s32.totalorder %s28, 0
      %p301 = por %p299, %p300
      %p302 = scmp.le.s32.totalorder 1, %s22
      %p303 = scmp.lt.s32.totalorder %s22, 3
      %p304 = pnand %p302, %p303
      %p305 = pneg %p304
      // Predicated region
      $region9: #{tpu_custom_call.1} parent=5 // pred_check
        _
      $region10: #{tpu_custom_call.1} parent=5 // pred_check_branch
        %307 = sbr.rel (%p304) target = $region12
      $region11: #{tpu_custom_call.1} parent=5 // pred_region
        %s308 = ssub.s32 %s22, 1
        // Predicated region
        $region13: #{tpu_custom_call.1} parent=11 // pred_check
          %p309 = pneg %p43
        $region14: #{tpu_custom_call.1} parent=11 // pred_check_branch
          %311 = sbr.rel (%p309) target = $region16
        $region15: #{tpu_custom_call.1} parent=11 // pred_region
          %s313 = ssub.s32 1024, 1024
          %314 = vsyncadd [#allocation4], %s313
          %s315 = sshll.u32 [#allocation3], 4
          %s316 = int_to_ptr.vmem [resolvable:$true] %s315
          %321 = dma.hbm_to_vmem [thread:$0]  %s0, 1024, %s316, [#allocation4], 64, 64, 4
        $region16: #{tpu_custom_call.1} parent=11 // pred_fallthru
          _
        // Predicated region
        $region17: #{tpu_custom_call.1} parent=11 // pred_check
          %p322 = pneg %p64
        $region18: #{tpu_custom_call.1} parent=11 // pred_check_branch
          %324 = sbr.rel (%p322) target = $region20
        $region19: #{tpu_custom_call.1} parent=11 // pred_region
          %s326 = ssub.s32 1024, 1024
          %327 = vsyncadd [#allocation7], %s326
          %s328 = sshll.u32 [#allocation6], 4
          %s329 = int_to_ptr.vmem [resolvable:$true] %s328
          %334 = dma.hbm_to_vmem [thread:$0]  %s1, 1024, %s329, [#allocation7], 64, 64, 4
        $region20: #{tpu_custom_call.1} parent=11 // pred_fallthru
          _
        // Predicated region
        $region21: #{tpu_custom_call.1} parent=11 // pred_check
          %p335 = pneg %p189
        $region22: #{tpu_custom_call.1} parent=11 // pred_check_branch
          %337 = sbr.rel (%p335) target = $region24
        $region23: #{tpu_custom_call.1} parent=11 // pred_region
          %s339 = ssub.s32 128, 128
          %340 = vsyncadd [#allocation7], %s339
          %s341 = sshll.u32 [#allocation12], 4
          %s342 = int_to_ptr.vmem [resolvable:$true] %s341
          %347 = dma.hbm_to_vmem [thread:$0]  %s6, 128, %s342, [#allocation7], 64, 64, 4
        $region24: #{tpu_custom_call.1} parent=11 // pred_fallthru
          _
        // Predicated region
        $region25: #{tpu_custom_call.1} parent=11 // pred_check
          %p348 = pneg %p210
        $region26: #{tpu_custom_call.1} parent=11 // pred_check_branch
          %350 = sbr.rel (%p348) target = $region28
        $region27: #{tpu_custom_call.1} parent=11 // pred_region
          %s352 = ssub.s32 128, 128
          %353 = vsyncadd [#allocation14], %s352
          %s355 = sshll.u32 [#allocation13], 4
          %s356 = int_to_ptr.vmem [resolvable:$true] %s355
          %358 = dma.hbm_to_vmem [thread:$0]  %s7, 128, %s356, [#allocation14]
        $region28: #{tpu_custom_call.1} parent=11 // pred_fallthru
          _
        // Predicated region
        $region29: #{tpu_custom_call.1} parent=11 // pred_check
          %p359 = pneg %p231
        $region30: #{tpu_custom_call.1} parent=11 // pred_check_branch
          %361 = sbr.rel (%p359) target = $region32
        $region31: #{tpu_custom_call.1} parent=11 // pred_region
          %s363 = ssub.s32 1024, 1024
          %364 = vsyncadd [#allocation14], %s363
          %s365 = sshll.u32 [#allocation15], 4
          %s366 = int_to_ptr.vmem [resolvable:$true] %s365
          %371 = dma.hbm_to_vmem [thread:$0]  %s8, 1024, %s366, [#allocation14], 64, 64, 4
        $region32: #{tpu_custom_call.1} parent=11 // pred_fallthru
          _
        // Predicated region
        $region33: #{tpu_custom_call.1} parent=11 // pred_check
          %p372 = pneg %p252
        $region34: #{tpu_custom_call.1} parent=11 // pred_check_branch
          %374 = sbr.rel (%p372) target = $region36
        $region35: #{tpu_custom_call.1} parent=11 // pred_region
          %s376 = ssub.s32 1024, 1024
          %377 = vsyncadd [#allocation17], %s376
          %s378 = sshll.u32 [#allocation16], 4
          %s379 = int_to_ptr.vmem [resolvable:$true] %s378
          %384 = dma.hbm_to_vmem [thread:$0]  %s9, 1024, %s379, [#allocation17], 64, 64, 4
        $region36: #{tpu_custom_call.1} parent=11 // pred_fallthru
          _
        // Predicated region
        $region37: #{tpu_custom_call.1} parent=11 // pred_check
          %p385 = pneg %p273
        $region38: #{tpu_custom_call.1} parent=11 // pred_check_branch
          %387 = sbr.rel (%p385) target = $region40
        $region39: #{tpu_custom_call.1} parent=11 // pred_region
          %s389 = ssub.s32 16, 16
          %390 = vsyncadd [#allocation17], %s389
          %s392 = sshll.u32 [#allocation18], 4
          %s393 = int_to_ptr.vmem [resolvable:$true] %s392
          %395 = dma.hbm_to_vmem [thread:$0]  %s10, 16, %s393, [#allocation17]
        $region40: #{tpu_custom_call.1} parent=11 // pred_fallthru
          _
      $region12: #{tpu_custom_call.1} parent=5 // pred_fallthru
        _
      %p396 = scmp.lt.s32.totalorder %s22, 2
      // Predicated region
      $region41: #{tpu_custom_call.1} parent=5 // pred_check
        %p397 = pneg %p396
      $region42: #{tpu_custom_call.1} parent=5 // pred_check_branch
        %399 = sbr.rel (%p397) target = $region44
      $region43: #{tpu_custom_call.1} parent=5 // pred_region
        // Predicated region
        $region45: #{tpu_custom_call.1} parent=43 // pred_check
          %p400 = pneg %p84
        $region46: #{tpu_custom_call.1} parent=43 // pred_check_branch
          %402 = sbr.rel (%p400) target = $region48
        $region47: #{tpu_custom_call.1} parent=43 // pred_region
          %s403 = sand.u32 %s22, 1
          %s404 = scalar_lea.sflag [#allocation4], %s403
          %s405 = sand.u32 %s74, 1
          %s406 = smul.addr %s405, 64
          %s407 = scalar_lea.vmem [#allocation8], %s406
          %s409 = ssub.s32 1024, 1024
          %410 = vsyncadd %s404, %s409
          %s411 = smul.addr %s22, 16
          %s412 = smul.addr %s411, 64
          %s413 = scalar_lea.hbm %s2, %s412
          %s414 = sshll.u32 %s407, 4
          %s415 = int_to_ptr.vmem [resolvable:$true] %s414
          %420 = dma.hbm_to_vmem [thread:$0]  %s413, 1024, %s415, %s404, 64, 64, 4
        $region48: #{tpu_custom_call.1} parent=43 // pred_fallthru
          _
        // Predicated region
        $region49: #{tpu_custom_call.1} parent=43 // pred_check
          %p421 = pneg %p110
        $region50: #{tpu_custom_call.1} parent=43 // pred_check_branch
          %423 = sbr.rel (%p421) target = $region52
        $region51: #{tpu_custom_call.1} parent=43 // pred_region
          %s424 = sand.u32 %s22, 1
          %s425 = scalar_lea.sflag [#allocation4], %s424
          %s426 = sand.u32 %s100, 1
          %s427 = smul.addr %s426, 128
          %s428 = scalar_lea.vmem [#allocation9], %s427
          %s430 = ssub.s32 2048, 2048
          %431 = vsyncadd %s425, %s430
          %s432 = smul.addr %s22, 16
          %s433 = smul.addr %s432, 128
          %s434 = scalar_lea.hbm %s3, %s433
          %s435 = sshll.u32 %s428, 4
          %s436 = int_to_ptr.vmem [resolvable:$true] %s435
          %441 = dma.hbm_to_vmem [thread:$0]  %s434, 2048, %s436, %s425, 128, 128, 8
        $region52: #{tpu_custom_call.1} parent=43 // pred_fallthru
          _
        // Predicated region
        $region53: #{tpu_custom_call.1} parent=43 // pred_check
          %p442 = pneg %p136
        $region54: #{tpu_custom_call.1} parent=43 // pred_check_branch
          %444 = sbr.rel (%p442) target = $region56
        $region55: #{tpu_custom_call.1} parent=43 // pred_region
          %s445 = sand.u32 %s22, 1
          %s446 = scalar_lea.sflag [#allocation4], %s445
          %s447 = sand.u32 %s126, 1
          %s448 = smul.addr %s447, 64
          %s449 = scalar_lea.vmem [#allocation10], %s448
          %s451 = ssub.s32 1024, 1024
          %452 = vsyncadd %s446, %s451
          %s453 = smul.addr %s22, 16
          %s454 = smul.addr %s453, 64
          %s455 = scalar_lea.hbm %s4, %s454
          %s456 = sshll.u32 %s449, 4
          %s457 = int_to_ptr.vmem [resolvable:$true] %s456
          %462 = dma.hbm_to_vmem [thread:$0]  %s455, 1024, %s457, %s446, 64, 64, 4
        $region56: #{tpu_custom_call.1} parent=43 // pred_fallthru
          _
        // Predicated region
        $region57: #{tpu_custom_call.1} parent=43 // pred_check
          %p463 = pneg %p162
        $region58: #{tpu_custom_call.1} parent=43 // pred_check_branch
          %465 = sbr.rel (%p463) target = $region60
        $region59: #{tpu_custom_call.1} parent=43 // pred_region
          %s466 = sand.u32 %s22, 1
          %s467 = scalar_lea.sflag [#allocation4], %s466
          %s468 = sand.u32 %s152, 1
          %s469 = scalar_lea.vmem [#allocation11], %s468
          %s471 = ssub.s32 16, 16
          %472 = vsyncadd %s467, %s471
          %s473 = smul.addr %s22, 16
          %s474 = scalar_lea.hbm %s5, %s473
          %s476 = sshll.u32 %s469, 4
          %s477 = int_to_ptr.vmem [resolvable:$true] %s476
          %479 = dma.hbm_to_vmem [thread:$0]  %s474, 16, %s477, %s467
        $region60: #{tpu_custom_call.1} parent=43 // pred_fallthru
          _
      $region44: #{tpu_custom_call.1} parent=5 // pred_fallthru
        _
      %p480 = scmp.le.s32.totalorder 1, %s22
      %p481 = scmp.lt.s32.totalorder %s22, 3
      %p482 = pnand %p480, %p481
      %p483 = pneg %p482
      // Predicated region
      $region61: #{tpu_custom_call.1} parent=5 // pred_check
        _
      $region62: #{tpu_custom_call.1} parent=5 // pred_check_branch
        %485 = sbr.rel (%p482) target = $region64
      $region63: #{tpu_custom_call.1} parent=5 // pred_region
        %s486 = ssub.s32 %s22, 1
        // Predicated region
        $region65: #{tpu_custom_call.1} parent=63 // pred_check
          %p487 = pneg %p43
        $region66: #{tpu_custom_call.1} parent=63 // pred_check_branch
          %489 = sbr.rel (%p487) target = $region68
        $region67: #{tpu_custom_call.1} parent=63 // pred_region
          %490 = dma.done [#allocation4], 1024
        $region68: #{tpu_custom_call.1} parent=63 // pred_fallthru
          _
        // Predicated region
        $region69: #{tpu_custom_call.1} parent=63 // pred_check
          %p491 = pneg %p64
        $region70: #{tpu_custom_call.1} parent=63 // pred_check_branch
          %493 = sbr.rel (%p491) target = $region72
        $region71: #{tpu_custom_call.1} parent=63 // pred_region
          %494 = dma.done [#allocation7], 1024
        $region72: #{tpu_custom_call.1} parent=63 // pred_fallthru
          _
        %s495 = sand.u32 %s27, 1
        %s496 = scalar_lea.sflag [#allocation4], %s495
        %s497 = sand.u32 %s77, 1
        %s498 = smul.addr %s497, 64
        %s499 = scalar_lea.vmem [#allocation8], %s498
        // Predicated region
        $region73: #{tpu_custom_call.1} parent=63 // pred_check
          %p500 = pneg %p90
        $region74: #{tpu_custom_call.1} parent=63 // pred_check_branch
          %502 = sbr.rel (%p500) target = $region76
        $region75: #{tpu_custom_call.1} parent=63 // pred_region
          %503 = dma.done %s496, 1024
        $region76: #{tpu_custom_call.1} parent=63 // pred_fallthru
          _
        %s504 = sand.u32 %s27, 1
        %s505 = scalar_lea.sflag [#allocation4], %s504
        %s506 = sand.u32 %s103, 1
        %s507 = smul.addr %s506, 128
        %s508 = scalar_lea.vmem [#allocation9], %s507
        // Predicated region
        $region77: #{tpu_custom_call.1} parent=63 // pred_check
          %p509 = pneg %p116
        $region78: #{tpu_custom_call.1} parent=63 // pred_check_branch
          %511 = sbr.rel (%p509) target = $region80
        $region79: #{tpu_custom_call.1} parent=63 // pred_region
          %512 = dma.done %s505, 2048
        $region80: #{tpu_custom_call.1} parent=63 // pred_fallthru
          _
        %s513 = sand.u32 %s27, 1
        %s514 = scalar_lea.sflag [#allocation4], %s513
        %s515 = sand.u32 %s129, 1
        %s516 = smul.addr %s515, 64
        %s517 = scalar_lea.vmem [#allocation10], %s516
        // Predicated region
        $region81: #{tpu_custom_call.1} parent=63 // pred_check
          %p518 = pneg %p142
        $region82: #{tpu_custom_call.1} parent=63 // pred_check_branch
          %520 = sbr.rel (%p518) target = $region84
        $region83: #{tpu_custom_call.1} parent=63 // pred_region
          %521 = dma.done %s514, 1024
        $region84: #{tpu_custom_call.1} parent=63 // pred_fallthru
          _
        %s522 = sand.u32 %s27, 1
        %s523 = scalar_lea.sflag [#allocation4], %s522
        %s524 = sand.u32 %s155, 1
        %s525 = scalar_lea.vmem [#allocation11], %s524
        // Predicated region
        $region85: #{tpu_custom_call.1} parent=63 // pred_check
          %p526 = pneg %p168
        $region86: #{tpu_custom_call.1} parent=63 // pred_check_branch
          %528 = sbr.rel (%p526) target = $region88
        $region87: #{tpu_custom_call.1} parent=63 // pred_region
          %529 = dma.done %s523, 16
        $region88: #{tpu_custom_call.1} parent=63 // pred_fallthru
          _
        // Predicated region
        $region89: #{tpu_custom_call.1} parent=63 // pred_check
          %p530 = pneg %p189
        $region90: #{tpu_custom_call.1} parent=63 // pred_check_branch
          %532 = sbr.rel (%p530) target = $region92
        $region91: #{tpu_custom_call.1} parent=63 // pred_region
          %533 = dma.done [#allocation7], 128
        $region92: #{tpu_custom_call.1} parent=63 // pred_fallthru
          _
        // Predicated region
        $region93: #{tpu_custom_call.1} parent=63 // pred_check
          %p534 = pneg %p210
        $region94: #{tpu_custom_call.1} parent=63 // pred_check_branch
          %536 = sbr.rel (%p534) target = $region96
        $region95: #{tpu_custom_call.1} parent=63 // pred_region
          %537 = dma.done [#allocation14], 128
        $region96: #{tpu_custom_call.1} parent=63 // pred_fallthru
          _
        // Predicated region
        $region97: #{tpu_custom_call.1} parent=63 // pred_check
          %p538 = pneg %p231
        $region98: #{tpu_custom_call.1} parent=63 // pred_check_branch
          %540 = sbr.rel (%p538) target = $region100
        $region99: #{tpu_custom_call.1} parent=63 // pred_region
          %541 = dma.done [#allocation14], 1024
        $region100: #{tpu_custom_call.1} parent=63 // pred_fallthru
          _
        // Predicated region
        $region101: #{tpu_custom_call.1} parent=63 // pred_check
          %p542 = pneg %p252
        $region102: #{tpu_custom_call.1} parent=63 // pred_check_branch
          %544 = sbr.rel (%p542) target = $region104
        $region103: #{tpu_custom_call.1} parent=63 // pred_region
          %545 = dma.done [#allocation17], 1024
        $region104: #{tpu_custom_call.1} parent=63 // pred_fallthru
          _
        // Predicated region
        $region105: #{tpu_custom_call.1} parent=63 // pred_check
          %p546 = pneg %p273
        $region106: #{tpu_custom_call.1} parent=63 // pred_check_branch
          %548 = sbr.rel (%p546) target = $region108
        $region107: #{tpu_custom_call.1} parent=63 // pred_region
          %549 = dma.done [#allocation17], 16
        $region108: #{tpu_custom_call.1} parent=63 // pred_fallthru
          _
        %p550 = pneg %p43
        %p551 = pneg %p40
        %p552 = pneg %p64
        %p553 = pneg %p61
        %s554 = sand.u32 %s27, 1
        %s555 = scalar_lea.sflag [#allocation4], %s554
        %s556 = sand.u32 %s77, 1
        %s557 = smul.addr %s556, 64
        %s558 = scalar_lea.vmem [#allocation8], %s557
        %p559 = pneg %p90
        %p560 = pneg %p87
        %s561 = sand.u32 %s27, 1
        %s562 = scalar_lea.sflag [#allocation4], %s561
        %s563 = sand.u32 %s103, 1
        %s564 = smul.addr %s563, 128
        %s565 = scalar_lea.vmem [#allocation9], %s564
        %p566 = pneg %p116
        %p567 = pneg %p113
        %s568 = sand.u32 %s27, 1
        %s569 = scalar_lea.sflag [#allocation4], %s568
        %s570 = sand.u32 %s129, 1
        %s571 = smul.addr %s570, 64
        %s572 = scalar_lea.vmem [#allocation10], %s571
        %p573 = pneg %p142
        %p574 = pneg %p139
        %s575 = sand.u32 %s27, 1
        %s576 = scalar_lea.sflag [#allocation4], %s575
        %s577 = sand.u32 %s155, 1
        %s578 = scalar_lea.vmem [#allocation11], %s577
        %p579 = pneg %p168
        %p580 = pneg %p165
        %p581 = pneg %p189
        %p582 = pneg %p186
        %p583 = pneg %p210
        %p584 = pneg %p207
        %p585 = pneg %p231
        %p586 = pneg %p228
        %p587 = pneg %p252
        %p588 = pneg %p249
        %p589 = pneg %p273
        %p590 = pneg %p270
        %p591 = pneg %p294
        %p592 = pneg %p291
        %p594 = scmp.eq.s32.totalorder %s27, 0
        // Predicated region
        $region109: #{tpu_custom_call.1} parent=63 // pred_check
          %p595 = pneg %p594
        $region110: #{tpu_custom_call.1} parent=63 // pred_check_branch
          %597 = sbr.rel (%p595) target = $region112
        $region111: #{tpu_custom_call.1} parent=63 // pred_region
          %v598 = vld [vmem:[#allocation6] sm:$0xf]
          %v599 = vld [vmem:[#allocation6 + $0x4] sm:$0xf]
          %v600 = vld [vmem:[#allocation6 + $0x8] sm:$0xf]
          %v601 = vld [vmem:[#allocation6 + $0xc] sm:$0xf]
          %v602 = vld [vmem:[#allocation6 + $0x10] sm:$0xf]
          %v603 = vld [vmem:[#allocation6 + $0x14] sm:$0xf]
          %v604 = vld [vmem:[#allocation6 + $0x18] sm:$0xf]
          %v605 = vld [vmem:[#allocation6 + $0x1c] sm:$0xf]
          %v606 = vld [vmem:[#allocation6 + $0x20] sm:$0xf]
          %v607 = vld [vmem:[#allocation6 + $0x24] sm:$0xf]
          %v608 = vld [vmem:[#allocation6 + $0x28] sm:$0xf]
          %v609 = vld [vmem:[#allocation6 + $0x2c] sm:$0xf]
          %v610 = vld [vmem:[#allocation6 + $0x30] sm:$0xf]
          %v611 = vld [vmem:[#allocation6 + $0x34] sm:$0xf]
          %v612 = vld [vmem:[#allocation6 + $0x38] sm:$0xf]
          %v613 = vld [vmem:[#allocation6 + $0x3c] sm:$0xf]
          %v630 = vunpack.c.l.b16 %v598
          %v631 = vunpack.c.l.b16 %v599
          %v632 = vunpack.c.l.b16 %v600
          %v633 = vunpack.c.l.b16 %v601
          %v634 = vunpack.c.l.b16 %v602
          %v635 = vunpack.c.l.b16 %v603
          %v636 = vunpack.c.l.b16 %v604
          %v637 = vunpack.c.l.b16 %v605
          %v638 = vunpack.c.l.b16 %v606
          %v639 = vunpack.c.l.b16 %v607
          %v640 = vunpack.c.l.b16 %v608
          %v641 = vunpack.c.l.b16 %v609
          %v642 = vunpack.c.l.b16 %v610
          %v643 = vunpack.c.l.b16 %v611
          %v644 = vunpack.c.l.b16 %v612
          %v645 = vunpack.c.l.b16 %v613
          %v646 = vpack.c.b16 %v631, %v630
          %v647 = vpack.c.b16 %v633, %v632
          %v648 = vpack.c.b16 %v635, %v634
          %v649 = vpack.c.b16 %v637, %v636
          %v650 = vpack.c.b16 %v639, %v638
          %v651 = vpack.c.b16 %v641, %v640
          %v652 = vpack.c.b16 %v643, %v642
          %v653 = vpack.c.b16 %v645, %v644
          %662 = vst [vmem:[#allocation2] sm:$0xff] %v646
          %663 = vst [vmem:[#allocation2 + $0x8] sm:$0xff] %v647
          %664 = vst [vmem:[#allocation2 + $0x10] sm:$0xff] %v648
          %665 = vst [vmem:[#allocation2 + $0x18] sm:$0xff] %v649
          %666 = vst [vmem:[#allocation2 + $0x20] sm:$0xff] %v650
          %667 = vst [vmem:[#allocation2 + $0x28] sm:$0xff] %v651
          %668 = vst [vmem:[#allocation2 + $0x30] sm:$0xff] %v652
          %669 = vst [vmem:[#allocation2 + $0x38] sm:$0xff] %v653
          %670 = vst [vmem:[#allocation19] sm:$0xff] 0.0
        $region112: #{tpu_custom_call.1} parent=63 // pred_fallthru
          _
        %v671 = vld [vmem:[#allocation2] sm:$0xff]
        %v672 = vld [vmem:[#allocation2 + $0x8] sm:$0xff]
        %v673 = vld [vmem:[#allocation2 + $0x10] sm:$0xff]
        %v674 = vld [vmem:[#allocation2 + $0x18] sm:$0xff]
        %v675 = vld [vmem:[#allocation2 + $0x20] sm:$0xff]
        %v676 = vld [vmem:[#allocation2 + $0x28] sm:$0xff]
        %v677 = vld [vmem:[#allocation2 + $0x30] sm:$0xff]
        %v678 = vld [vmem:[#allocation2 + $0x38] sm:$0xff]
        %v679 = vld [vmem:[#allocation3] sm:$0xf]
        %v680 = vld [vmem:[#allocation3 + $0x4] sm:$0xf]
        %v681 = vld [vmem:[#allocation3 + $0x8] sm:$0xf]
        %v682 = vld [vmem:[#allocation3 + $0xc] sm:$0xf]
        %v683 = vld [vmem:[#allocation3 + $0x10] sm:$0xf]
        %v684 = vld [vmem:[#allocation3 + $0x14] sm:$0xf]
        %v685 = vld [vmem:[#allocation3 + $0x18] sm:$0xf]
        %v686 = vld [vmem:[#allocation3 + $0x1c] sm:$0xf]
        %v687 = vld [vmem:[#allocation3 + $0x20] sm:$0xf]
        %v688 = vld [vmem:[#allocation3 + $0x24] sm:$0xf]
        %v689 = vld [vmem:[#allocation3 + $0x28] sm:$0xf]
        %v690 = vld [vmem:[#allocation3 + $0x2c] sm:$0xf]
        %v691 = vld [vmem:[#allocation3 + $0x30] sm:$0xf]
        %v692 = vld [vmem:[#allocation3 + $0x34] sm:$0xf]
        %v693 = vld [vmem:[#allocation3 + $0x38] sm:$0xf]
        %v694 = vld [vmem:[#allocation3 + $0x3c] sm:$0xf]
        %v711 = vunpack.c.l.b16 %v679
        %v712 = vunpack.c.l.b16 %v680
        %v713 = vunpack.c.l.b16 %v681
        %v714 = vunpack.c.l.b16 %v682
        %v715 = vunpack.c.l.b16 %v683
        %v716 = vunpack.c.l.b16 %v684
        %v717 = vunpack.c.l.b16 %v685
        %v718 = vunpack.c.l.b16 %v686
        %v719 = vunpack.c.l.b16 %v687
        %v720 = vunpack.c.l.b16 %v688
        %v721 = vunpack.c.l.b16 %v689
        %v722 = vunpack.c.l.b16 %v690
        %v723 = vunpack.c.l.b16 %v691
        %v724 = vunpack.c.l.b16 %v692
        %v725 = vunpack.c.l.b16 %v693
        %v726 = vunpack.c.l.b16 %v694
        %v727 = vpack.c.b16 %v712, %v711
        %v728 = vpack.c.b16 %v714, %v713
        %v729 = vpack.c.b16 %v716, %v715
        %v730 = vpack.c.b16 %v718, %v717
        %v731 = vpack.c.b16 %v720, %v719
        %v732 = vpack.c.b16 %v722, %v721
        %v733 = vpack.c.b16 %v724, %v723
        %v734 = vpack.c.b16 %v726, %v725
        %743 = vmatprep.subr.bf16.mxu0 0
        %744 = vmatpush1.bf16.msra.mxu0 %v671
        %745 = vmatprep.subr.bf16.mxu0 0
        %746 = vmatpush1.bf16.msra.mxu0 %v672
        %747 = vmatprep.subr.bf16.mxu0 0
        %748 = vmatpush1.bf16.msra.mxu0 %v673
        %749 = vmatprep.subr.bf16.mxu0 0
        %750 = vmatpush1.bf16.msra.mxu0 %v674
        %751 = vmatprep.subr.bf16.mxu0 0
        %752 = vmatpush1.bf16.msra.mxu0 %v675
        %753 = vmatprep.subr.bf16.mxu0 0
        %754 = vmatpush1.bf16.msra.mxu0 %v676
        %755 = vmatprep.subr.bf16.mxu0 0
        %756 = vmatpush1.bf16.msra.mxu0 %v677
        %757 = vmatprep.subr.bf16.mxu0 0
        %758 = vmatpush1.bf16.msra.mxu0 %v678
        %759 = vmatprep.subr.bf16.mxu0 0
        %760 = vmatpush1.bf16.msra.mxu0 0
        %761 = vmatprep.subr.bf16.mxu0 0
        %762 = vmatpush1.bf16.msra.mxu0 0
        %763 = vmatprep.subr.bf16.mxu0 0
        %764 = vmatpush1.bf16.msra.mxu0 0
        %765 = vmatprep.subr.bf16.mxu0 0
        %766 = vmatpush1.bf16.msra.mxu0 0
        %767 = vmatprep.subr.bf16.mxu0 0
        %768 = vmatpush1.bf16.msra.mxu0 0
        %769 = vmatprep.subr.bf16.mxu0 0
        %770 = vmatpush1.bf16.msra.mxu0 0
        %771 = vmatprep.subr.bf16.mxu0 0
        %772 = vmatpush1.bf16.msra.mxu0 0
        %773 = vmatprep.subr.bf16.mxu0 0
        %774 = vmatpush1.bf16.msra.mxu0 0
        %775 = vmatprep.mubr.bf16.mxu0 0
        %776 = vmatmul.mubr.bf16.gmra.mrb[0].mxu0 %v727
        %v777 = vpop.f32.mrb[0].mxu0
        %v778 = vadd.f32 0.0, %v777
        %v779 = vpop.f32.mrb[0].mxu0
        %v780 = vpop.f32.mrb[0].mxu0
        %v781 = vadd.f32 0.0, %v780
        %v782 = vpop.f32.mrb[0].mxu0
        %783 = vmatprep.mubr.bf16.mxu0 0
        %784 = vmatmul.mubr.bf16.gmra.mrb[0].mxu0 %v728
        %v785 = vpop.f32.mrb[0].mxu0
        %v786 = vadd.f32 0.0, %v785
        %v787 = vpop.f32.mrb[0].mxu0
        %v788 = vpop.f32.mrb[0].mxu0
        %v789 = vadd.f32 0.0, %v788
        %v790 = vpop.f32.mrb[0].mxu0
        %791 = vmatprep.mubr.bf16.mxu0 0
        %792 = vmatmul.mubr.bf16.gmra.mrb[0].mxu0 %v729
        %v793 = vpop.f32.mrb[0].mxu0
        %v794 = vadd.f32 0.0, %v793
        %v795 = vpop.f32.mrb[0].mxu0
        %v796 = vpop.f32.mrb[0].mxu0
        %v797 = vadd.f32 0.0, %v796
        %v798 = vpop.f32.mrb[0].mxu0
        %799 = vmatprep.mubr.bf16.mxu0 0
        %800 = vmatmul.mubr.bf16.gmra.mrb[0].mxu0 %v730
        %v801 = vpop.f32.mrb[0].mxu0
        %v802 = vadd.f32 0.0, %v801
        %v803 = vpop.f32.mrb[0].mxu0
        %v804 = vpop.f32.mrb[0].mxu0
        %v805 = vadd.f32 0.0, %v804
        %v806 = vpop.f32.mrb[0].mxu0
        %807 = vmatprep.mubr.bf16.mxu0 0
        %808 = vmatmul.mubr.bf16.gmra.mrb[0].mxu0 %v731
        %v809 = vpop.f32.mrb[0].mxu0
        %v810 = vadd.f32 0.0, %v809
        %v811 = vpop.f32.mrb[0].mxu0
        %v812 = vpop.f32.mrb[0].mxu0
        %v813 = vadd.f32 0.0, %v812
        %v814 = vpop.f32.mrb[0].mxu0
        %815 = vmatprep.mubr.bf16.mxu0 0
        %816 = vmatmul.mubr.bf16.gmra.mrb[0].mxu0 %v732
        %v817 = vpop.f32.mrb[0].mxu0
        %v818 = vadd.f32 0.0, %v817
        %v819 = vpop.f32.mrb[0].mxu0
        %v820 = vpop.f32.mrb[0].mxu0
        %v821 = vadd.f32 0.0, %v820
        %v822 = vpop.f32.mrb[0].mxu0
        %823 = vmatprep.mubr.bf16.mxu0 0
        %824 = vmatmul.mubr.bf16.gmra.mrb[0].mxu0 %v733
        %v825 = vpop.f32.mrb[0].mxu0
        %v826 = vadd.f32 0.0, %v825
        %v827 = vpop.f32.mrb[0].mxu0
        %v828 = vpop.f32.mrb[0].mxu0
        %v829 = vadd.f32 0.0, %v828
        %v830 = vpop.f32.mrb[0].mxu0
        %831 = vmatprep.mubr.bf16.mxu0 0
        %832 = vmatmul.mubr.bf16.gmra.mrb[0].mxu0 %v734
        %v833 = vpop.f32.mrb[0].mxu0
        %v834 = vadd.f32 0.0, %v833
        %v835 = vpop.f32.mrb[0].mxu0
        %v836 = vpop.f32.mrb[0].mxu0
        %v837 = vadd.f32 0.0, %v836
        %v838 = vpop.f32.mrb[0].mxu0
        %839 = vdwg.mxu0
        %v840 = vpack.c.bf16 %v781, %v778
        %v841 = vpack.c.bf16 %v789, %v786
        %v842 = vpack.c.bf16 %v797, %v794
        %v843 = vpack.c.bf16 %v805, %v802
        %v844 = vpack.c.bf16 %v813, %v810
        %v845 = vpack.c.bf16 %v821, %v818
        %v846 = vpack.c.bf16 %v829, %v826
        %v847 = vpack.c.bf16 %v837, %v834
        %v848 = vld [vmem:[%s499] sm:$0xf]
        %v849 = vld [vmem:[%s499 + $0x4] sm:$0xf]
        %v850 = vld [vmem:[%s499 + $0x8] sm:$0xf]
        %v851 = vld [vmem:[%s499 + $0xc] sm:$0xf]
        %v852 = vld [vmem:[%s499 + $0x10] sm:$0xf]
        %v853 = vld [vmem:[%s499 + $0x14] sm:$0xf]
        %v854 = vld [vmem:[%s499 + $0x18] sm:$0xf]
        %v855 = vld [vmem:[%s499 + $0x1c] sm:$0xf]
        %v856 = vld [vmem:[%s499 + $0x20] sm:$0xf]
        %v857 = vld [vmem:[%s499 + $0x24] sm:$0xf]
        %v858 = vld [vmem:[%s499 + $0x28] sm:$0xf]
        %v859 = vld [vmem:[%s499 + $0x2c] sm:$0xf]
        %v860 = vld [vmem:[%s499 + $0x30] sm:$0xf]
        %v861 = vld [vmem:[%s499 + $0x34] sm:$0xf]
        %v862 = vld [vmem:[%s499 + $0x38] sm:$0xf]
        %v863 = vld [vmem:[%s499 + $0x3c] sm:$0xf]
        %v864 = vld [vmem:[%s508] sm:$0xff]
        %v865 = vld [vmem:[%s508 + $0x8] sm:$0xff]
        %v866 = vld [vmem:[%s508 + $0x10] sm:$0xff]
        %v867 = vld [vmem:[%s508 + $0x18] sm:$0xff]
        %v868 = vld [vmem:[%s508 + $0x20] sm:$0xff]
        %v869 = vld [vmem:[%s508 + $0x28] sm:$0xff]
        %v870 = vld [vmem:[%s508 + $0x30] sm:$0xff]
        %v871 = vld [vmem:[%s508 + $0x38] sm:$0xff]
        %v872 = vld [vmem:[%s508 + $0x40] sm:$0xff]
        %v873 = vld [vmem:[%s508 + $0x48] sm:$0xff]
        %v874 = vld [vmem:[%s508 + $0x50] sm:$0xff]
        %v875 = vld [vmem:[%s508 + $0x58] sm:$0xff]
        %v876 = vld [vmem:[%s508 + $0x60] sm:$0xff]
        %v877 = vld [vmem:[%s508 + $0x68] sm:$0xff]
        %v878 = vld [vmem:[%s508 + $0x70] sm:$0xff]
        %v879 = vld [vmem:[%s508 + $0x78] sm:$0xff]
        %v896 = vunpack.c.l.b16 %v848
        %v897 = vunpack.c.l.b16 %v849
        %v898 = vunpack.c.l.b16 %v850
        %v899 = vunpack.c.l.b16 %v851
        %v900 = vunpack.c.l.b16 %v852
        %v901 = vunpack.c.l.b16 %v853
        %v902 = vunpack.c.l.b16 %v854
        %v903 = vunpack.c.l.b16 %v855
        %v904 = vunpack.c.l.b16 %v856
        %v905 = vunpack.c.l.b16 %v857
        %v906 = vunpack.c.l.b16 %v858
        %v907 = vunpack.c.l.b16 %v859
        %v908 = vunpack.c.l.b16 %v860
        %v909 = vunpack.c.l.b16 %v861
        %v910 = vunpack.c.l.b16 %v862
        %v911 = vunpack.c.l.b16 %v863
        %v912 = vpack.c.b16 %v897, %v896
        %v913 = vpack.c.b16 %v899, %v898
        %v914 = vpack.c.b16 %v901, %v900
        %v915 = vpack.c.b16 %v903, %v902
        %v916 = vpack.c.b16 %v905, %v904
        %v917 = vpack.c.b16 %v907, %v906
        %v918 = vpack.c.b16 %v909, %v908
        %v919 = vpack.c.b16 %v911, %v910
        %928 = vmatprep.subr.bf16.mxu0 0
        %929 = vmatpush1.bf16.msra.mxu0 %v912
        %930 = vmatprep.subr.bf16.mxu0 0
        %931 = vmatpush1.bf16.msra.mxu0 %v913
        %932 = vmatprep.subr.bf16.mxu0 0
        %933 = vmatpush1.bf16.msra.mxu0 %v914
        %934 = vmatprep.subr.bf16.mxu0 0
        %935 = vmatpush1.bf16.msra.mxu0 %v915
        %936 = vmatprep.subr.bf16.mxu0 0
        %937 = vmatpush1.bf16.msra.mxu0 %v916
        %938 = vmatprep.subr.bf16.mxu0 0
        %939 = vmatpush1.bf16.msra.mxu0 %v917
        %940 = vmatprep.subr.bf16.mxu0 0
        %941 = vmatpush1.bf16.msra.mxu0 %v918
        %942 = vmatprep.subr.bf16.mxu0 0
        %943 = vmatpush1.bf16.msra.mxu0 %v919
        %944 = vmatprep.subr.bf16.mxu0 0
        %945 = vmatpush1.bf16.msra.mxu0 0
        %946 = vmatprep.subr.bf16.mxu0 0
        %947 = vmatpush1.bf16.msra.mxu0 0
        %948 = vmatprep.subr.bf16.mxu0 0
        %949 = vmatpush1.bf16.msra.mxu0 0
        %950 = vmatprep.subr.bf16.mxu0 0
        %951 = vmatpush1.bf16.msra.mxu0 0
        %952 = vmatprep.subr.bf16.mxu0 0
        %953 = vmatpush1.bf16.msra.mxu0 0
        %954 = vmatprep.subr.bf16.mxu0 0
        %955 = vmatpush1.bf16.msra.mxu0 0
        %956 = vmatprep.subr.bf16.mxu0 0
        %957 = vmatpush1.bf16.msra.mxu0 0
        %958 = vmatprep.subr.bf16.mxu0 0
        %959 = vmatpush1.bf16.msra.mxu0 0
        %960 = vmatprep.mubr.bf16.mxu0 0
        %961 = vmatmul.mubr.bf16.gmra.mrb[0].mxu0 %v840
        %v962 = vpop.f32.mrb[0].mxu0
        %v963 = vadd.f32 %v864, %v962
        %v964 = vpop.f32.mrb[0].mxu0
        %v965 = vpop.f32.mrb[0].mxu0
        %v966 = vadd.f32 %v865, %v965
        %v967 = vpop.f32.mrb[0].mxu0
        %968 = vmatprep.mubr.bf16.mxu0 0
        %969 = vmatmul.mubr.bf16.gmra.mrb[0].mxu0 %v841
        %v970 = vpop.f32.mrb[0].mxu0
        %v971 = vadd.f32 %v866, %v970
        %v972 = vpop.f32.mrb[0].mxu0
        %v973 = vpop.f32.mrb[0].mxu0
        %v974 = vadd.f32 %v867, %v973
        %v975 = vpop.f32.mrb[0].mxu0
        %976 = vmatprep.mubr.bf16.mxu0 0
        %977 = vmatmul.mubr.bf16.gmra.mrb[0].mxu0 %v842
        %v978 = vpop.f32.mrb[0].mxu0
        %v979 = vadd.f32 %v868, %v978
        %v980 = vpop.f32.mrb[0].mxu0
        %v981 = vpop.f32.mrb[0].mxu0
        %v982 = vadd.f32 %v869, %v981
        %v983 = vpop.f32.mrb[0].mxu0
        %984 = vmatprep.mubr.bf16.mxu0 0
        %985 = vmatmul.mubr.bf16.gmra.mrb[0].mxu0 %v843
        %v986 = vpop.f32.mrb[0].mxu0
        %v987 = vadd.f32 %v870, %v986
        %v988 = vpop.f32.mrb[0].mxu0
        %v989 = vpop.f32.mrb[0].mxu0
        %v990 = vadd.f32 %v871, %v989
        %v991 = vpop.f32.mrb[0].mxu0
        %992 = vmatprep.mubr.bf16.mxu0 0
        %993 = vmatmul.mubr.bf16.gmra.mrb[0].mxu0 %v844
        %v994 = vpop.f32.mrb[0].mxu0
        %v995 = vadd.f32 %v872, %v994
        %v996 = vpop.f32.mrb[0].mxu0
        %v997 = vpop.f32.mrb[0].mxu0
        %v998 = vadd.f32 %v873, %v997
        %v999 = vpop.f32.mrb[0].mxu0
        %1000 = vmatprep.mubr.bf16.mxu0 0
        %1001 = vmatmul.mubr.bf16.gmra.mrb[0].mxu0 %v845
        %v1002 = vpop.f32.mrb[0].mxu0
        %v1003 = vadd.f32 %v874, %v1002
        %v1004 = vpop.f32.mrb[0].mxu0
        %v1005 = vpop.f32.mrb[0].mxu0
        %v1006 = vadd.f32 %v875, %v1005
        %v1007 = vpop.f32.mrb[0].mxu0
        %1008 = vmatprep.mubr.bf16.mxu0 0
        %1009 = vmatmul.mubr.bf16.gmra.mrb[0].mxu0 %v846
        %v1010 = vpop.f32.mrb[0].mxu0
        %v1011 = vadd.f32 %v876, %v1010
        %v1012 = vpop.f32.mrb[0].mxu0
        %v1013 = vpop.f32.mrb[0].mxu0
        %v1014 = vadd.f32 %v877, %v1013
        %v1015 = vpop.f32.mrb[0].mxu0
        %1016 = vmatprep.mubr.bf16.mxu0 0
        %1017 = vmatmul.mubr.bf16.gmra.mrb[0].mxu0 %v847
        %v1018 = vpop.f32.mrb[0].mxu0
        %v1019 = vadd.f32 %v878, %v1018
        %v1020 = vpop.f32.mrb[0].mxu0
        %v1021 = vpop.f32.mrb[0].mxu0
        %v1022 = vadd.f32 %v879, %v1021
        %v1023 = vpop.f32.mrb[0].mxu0
        %1024 = vdwg.mxu0
        %v1025 = vmax.f32 %v963, 0.0
        %v1026 = vmax.f32 %v966, 0.0
        %v1027 = vmax.f32 %v971, 0.0
        %v1028 = vmax.f32 %v974, 0.0
        %v1029 = vmax.f32 %v979, 0.0
        %v1030 = vmax.f32 %v982, 0.0
        %v1031 = vmax.f32 %v987, 0.0
        %v1032 = vmax.f32 %v990, 0.0
        %v1033 = vmax.f32 %v995, 0.0
        %v1034 = vmax.f32 %v998, 0.0
        %v1035 = vmax.f32 %v1003, 0.0
        %v1036 = vmax.f32 %v1006, 0.0
        %v1037 = vmax.f32 %v1011, 0.0
        %v1038 = vmax.f32 %v1014, 0.0
        %v1039 = vmax.f32 %v1019, 0.0
        %v1040 = vmax.f32 %v1022, 0.0
        %v1041 = vpack.c.bf16 %v1026, %v1025
        %v1042 = vpack.c.bf16 %v1028, %v1027
        %v1043 = vpack.c.bf16 %v1030, %v1029
        %v1044 = vpack.c.bf16 %v1032, %v1031
        %v1045 = vpack.c.bf16 %v1034, %v1033
        %v1046 = vpack.c.bf16 %v1036, %v1035
        %v1047 = vpack.c.bf16 %v1038, %v1037
        %v1048 = vpack.c.bf16 %v1040, %v1039
        %v1049 = vld [vmem:[%s517] sm:$0xf]
        %v1050 = vld [vmem:[%s517 + $0x4] sm:$0xf]
        %v1051 = vld [vmem:[%s517 + $0x8] sm:$0xf]
        %v1052 = vld [vmem:[%s517 + $0xc] sm:$0xf]
        %v1053 = vld [vmem:[%s517 + $0x10] sm:$0xf]
        %v1054 = vld [vmem:[%s517 + $0x14] sm:$0xf]
        %v1055 = vld [vmem:[%s517 + $0x18] sm:$0xf]
        %v1056 = vld [vmem:[%s517 + $0x1c] sm:$0xf]
        %v1057 = vld [vmem:[%s517 + $0x20] sm:$0xf]
        %v1058 = vld [vmem:[%s517 + $0x24] sm:$0xf]
        %v1059 = vld [vmem:[%s517 + $0x28] sm:$0xf]
        %v1060 = vld [vmem:[%s517 + $0x2c] sm:$0xf]
        %v1061 = vld [vmem:[%s517 + $0x30] sm:$0xf]
        %v1062 = vld [vmem:[%s517 + $0x34] sm:$0xf]
        %v1063 = vld [vmem:[%s517 + $0x38] sm:$0xf]
        %v1064 = vld [vmem:[%s517 + $0x3c] sm:$0xf]
        %v1065 = vld [vmem:[%s525] sm:$0x1]
        %v1067 = vlaneseq
        %v1068 = vshrl.u32 %v1067, 7
        %v1069 = vsub.s32 0, %v1068
        %v1070 = vrot.slane %v1065, %v1069
        %v1088 = vunpack.c.l.b16 %v1049
        %v1089 = vunpack.c.l.b16 %v1050
        %v1090 = vunpack.c.l.b16 %v1051
        %v1091 = vunpack.c.l.b16 %v1052
        %v1092 = vunpack.c.l.b16 %v1053
        %v1093 = vunpack.c.l.b16 %v1054
        %v1094 = vunpack.c.l.b16 %v1055
        %v1095 = vunpack.c.l.b16 %v1056
        %v1096 = vunpack.c.l.b16 %v1057
        %v1097 = vunpack.c.l.b16 %v1058
        %v1098 = vunpack.c.l.b16 %v1059
        %v1099 = vunpack.c.l.b16 %v1060
        %v1100 = vunpack.c.l.b16 %v1061
        %v1101 = vunpack.c.l.b16 %v1062
        %v1102 = vunpack.c.l.b16 %v1063
        %v1103 = vunpack.c.l.b16 %v1064
        %v1104 = vpack.c.b16 %v1089, %v1088
        %v1105 = vpack.c.b16 %v1091, %v1090
        %v1106 = vpack.c.b16 %v1093, %v1092
        %v1107 = vpack.c.b16 %v1095, %v1094
        %v1108 = vpack.c.b16 %v1097, %v1096
        %v1109 = vpack.c.b16 %v1099, %v1098
        %v1110 = vpack.c.b16 %v1101, %v1100
        %v1111 = vpack.c.b16 %v1103, %v1102
        %1120 = vmatprep.subr.bf16.mxu0 0
        %1121 = vmatpush1.bf16.msra.mxu0 %v1104
        %1122 = vmatprep.subr.bf16.mxu0 0
        %1123 = vmatpush1.bf16.msra.mxu0 %v1105
        %1124 = vmatprep.subr.bf16.mxu0 0
        %1125 = vmatpush1.bf16.msra.mxu0 %v1106
        %1126 = vmatprep.subr.bf16.mxu0 0
        %1127 = vmatpush1.bf16.msra.mxu0 %v1107
        %1128 = vmatprep.subr.bf16.mxu0 0
        %1129 = vmatpush1.bf16.msra.mxu0 %v1108
        %1130 = vmatprep.subr.bf16.mxu0 0
        %1131 = vmatpush1.bf16.msra.mxu0 %v1109
        %1132 = vmatprep.subr.bf16.mxu0 0
        %1133 = vmatpush1.bf16.msra.mxu0 %v1110
        %1134 = vmatprep.subr.bf16.mxu0 0
        %1135 = vmatpush1.bf16.msra.mxu0 %v1111
        %1136 = vmatprep.subr.bf16.mxu0 0
        %1137 = vmatpush1.bf16.msra.mxu0 0
        %1138 = vmatprep.subr.bf16.mxu0 0
        %1139 = vmatpush1.bf16.msra.mxu0 0
        %1140 = vmatprep.subr.bf16.mxu0 0
        %1141 = vmatpush1.bf16.msra.mxu0 0
        %1142 = vmatprep.subr.bf16.mxu0 0
        %1143 = vmatpush1.bf16.msra.mxu0 0
        %1144 = vmatprep.subr.bf16.mxu0 0
        %1145 = vmatpush1.bf16.msra.mxu0 0
        %1146 = vmatprep.subr.bf16.mxu0 0
        %1147 = vmatpush1.bf16.msra.mxu0 0
        %1148 = vmatprep.subr.bf16.mxu0 0
        %1149 = vmatpush1.bf16.msra.mxu0 0
        %1150 = vmatprep.subr.bf16.mxu0 0
        %1151 = vmatpush1.bf16.msra.mxu0 0
        %1152 = vmatprep.mubr.bf16.mxu0 0
        %1153 = vmatmul.mubr.bf16.gmra.mrb[0].mxu0 %v1041
        %v1154 = vpop.f32.mrb[0].mxu0
        %v1155 = vadd.f32 %v1070, %v1154
        %v1156 = vpop.f32.mrb[0].mxu0
        %v1157 = vpop.f32.mrb[0].mxu0
        %v1158 = vadd.f32 %v1070, %v1157
        %v1159 = vpop.f32.mrb[0].mxu0
        %1160 = vmatprep.mubr.bf16.mxu0 0
        %1161 = vmatmul.mubr.bf16.gmra.mrb[0].mxu0 %v1042
        %v1162 = vpop.f32.mrb[0].mxu0
        %v1163 = vadd.f32 %v1070, %v1162
        %v1164 = vpop.f32.mrb[0].mxu0
        %v1165 = vpop.f32.mrb[0].mxu0
        %v1166 = vadd.f32 %v1070, %v1165
        %v1167 = vpop.f32.mrb[0].mxu0
        %1168 = vmatprep.mubr.bf16.mxu0 0
        %1169 = vmatmul.mubr.bf16.gmra.mrb[0].mxu0 %v1043
        %v1170 = vpop.f32.mrb[0].mxu0
        %v1171 = vadd.f32 %v1070, %v1170
        %v1172 = vpop.f32.mrb[0].mxu0
        %v1173 = vpop.f32.mrb[0].mxu0
        %v1174 = vadd.f32 %v1070, %v1173
        %v1175 = vpop.f32.mrb[0].mxu0
        %1176 = vmatprep.mubr.bf16.mxu0 0
        %1177 = vmatmul.mubr.bf16.gmra.mrb[0].mxu0 %v1044
        %v1178 = vpop.f32.mrb[0].mxu0
        %v1179 = vadd.f32 %v1070, %v1178
        %v1180 = vpop.f32.mrb[0].mxu0
        %v1181 = vpop.f32.mrb[0].mxu0
        %v1182 = vadd.f32 %v1070, %v1181
        %v1183 = vpop.f32.mrb[0].mxu0
        %1184 = vmatprep.mubr.bf16.mxu0 0
        %1185 = vmatmul.mubr.bf16.gmra.mrb[0].mxu0 %v1045
        %v1186 = vpop.f32.mrb[0].mxu0
        %v1187 = vadd.f32 %v1070, %v1186
        %v1188 = vpop.f32.mrb[0].mxu0
        %v1189 = vpop.f32.mrb[0].mxu0
        %v1190 = vadd.f32 %v1070, %v1189
        %v1191 = vpop.f32.mrb[0].mxu0
        %1192 = vmatprep.mubr.bf16.mxu0 0
        %1193 = vmatmul.mubr.bf16.gmra.mrb[0].mxu0 %v1046
        %v1194 = vpop.f32.mrb[0].mxu0
        %v1195 = vadd.f32 %v1070, %v1194
        %v1196 = vpop.f32.mrb[0].mxu0
        %v1197 = vpop.f32.mrb[0].mxu0
        %v1198 = vadd.f32 %v1070, %v1197
        %v1199 = vpop.f32.mrb[0].mxu0
        %1200 = vmatprep.mubr.bf16.mxu0 0
        %1201 = vmatmul.mubr.bf16.gmra.mrb[0].mxu0 %v1047
        %v1202 = vpop.f32.mrb[0].mxu0
        %v1203 = vadd.f32 %v1070, %v1202
        %v1204 = vpop.f32.mrb[0].mxu0
        %v1205 = vpop.f32.mrb[0].mxu0
        %v1206 = vadd.f32 %v1070, %v1205
        %v1207 = vpop.f32.mrb[0].mxu0
        %1208 = vmatprep.mubr.bf16.mxu0 0
        %1209 = vmatmul.mubr.bf16.gmra.mrb[0].mxu0 %v1048
        %v1210 = vpop.f32.mrb[0].mxu0
        %v1211 = vadd.f32 %v1070, %v1210
        %v1212 = vpop.f32.mrb[0].mxu0
        %v1213 = vpop.f32.mrb[0].mxu0
        %v1214 = vadd.f32 %v1070, %v1213
        %v1215 = vpop.f32.mrb[0].mxu0
        %1216 = vdwg.mxu0
        %p1217 = scmp.lt.s32.totalorder %s27, 1
        // Predicated region
        $region113: #{tpu_custom_call.1} parent=63 // pred_check
          %p1218 = pneg %p1217
        $region114: #{tpu_custom_call.1} parent=63 // pred_check_branch
          %1220 = sbr.rel (%p1218) target = $region116
        $region115: #{tpu_custom_call.1} parent=63 // pred_region
          %v1221 = vmax.f32 %v1155, 0.0
          %v1222 = vmax.f32 %v1158, 0.0
          %v1223 = vmax.f32 %v1163, 0.0
          %v1224 = vmax.f32 %v1166, 0.0
          %v1225 = vmax.f32 %v1171, 0.0
          %v1226 = vmax.f32 %v1174, 0.0
          %v1227 = vmax.f32 %v1179, 0.0
          %v1228 = vmax.f32 %v1182, 0.0
          %v1229 = vmax.f32 %v1187, 0.0
          %v1230 = vmax.f32 %v1190, 0.0
          %v1231 = vmax.f32 %v1195, 0.0
          %v1232 = vmax.f32 %v1198, 0.0
          %v1233 = vmax.f32 %v1203, 0.0
          %v1234 = vmax.f32 %v1206, 0.0
          %v1235 = vmax.f32 %v1211, 0.0
          %v1236 = vmax.f32 %v1214, 0.0
          %v1237 = vpack.c.bf16 %v1222, %v1221
          %v1238 = vpack.c.bf16 %v1224, %v1223
          %v1239 = vpack.c.bf16 %v1226, %v1225
          %v1240 = vpack.c.bf16 %v1228, %v1227
          %v1241 = vpack.c.bf16 %v1230, %v1229
          %v1242 = vpack.c.bf16 %v1232, %v1231
          %v1243 = vpack.c.bf16 %v1234, %v1233
          %v1244 = vpack.c.bf16 %v1236, %v1235
          %1245 = vst [vmem:[#allocation2] sm:$0xff] %v1237
          %1246 = vst [vmem:[#allocation2 + $0x8] sm:$0xff] %v1238
          %1247 = vst [vmem:[#allocation2 + $0x10] sm:$0xff] %v1239
          %1248 = vst [vmem:[#allocation2 + $0x18] sm:$0xff] %v1240
          %1249 = vst [vmem:[#allocation2 + $0x20] sm:$0xff] %v1241
          %1250 = vst [vmem:[#allocation2 + $0x28] sm:$0xff] %v1242
          %1251 = vst [vmem:[#allocation2 + $0x30] sm:$0xff] %v1243
          %1252 = vst [vmem:[#allocation2 + $0x38] sm:$0xff] %v1244
        $region116: #{tpu_custom_call.1} parent=63 // pred_fallthru
          _
        %p1253 = scmp.eq.s32.totalorder %s27, 1
        // Predicated region
        $region117: #{tpu_custom_call.1} parent=63 // pred_check
          %p1254 = pneg %p1253
        $region118: #{tpu_custom_call.1} parent=63 // pred_check_branch
          %1256 = sbr.rel (%p1254) target = $region120
        $region119: #{tpu_custom_call.1} parent=63 // pred_region
          %v1257 = vpack.c.bf16 %v1158, %v1155
          %v1258 = vpack.c.bf16 %v1166, %v1163
          %v1259 = vpack.c.bf16 %v1174, %v1171
          %v1260 = vpack.c.bf16 %v1182, %v1179
          %v1261 = vpack.c.bf16 %v1190, %v1187
          %v1262 = vpack.c.bf16 %v1198, %v1195
          %v1263 = vpack.c.bf16 %v1206, %v1203
          %v1264 = vpack.c.bf16 %v1214, %v1211
          %v1265 = vld [vmem:[#allocation12] sm:$0xf]
          %v1266 = vld [vmem:[#allocation12 + $0x4] sm:$0xf]
          %v1269 = vunpack.c.l.b16 %v1265
          %v1270 = vunpack.c.l.b16 %v1266
          %v1271 = vpack.c.b16 %v1270, %v1269
          %1273 = vmatprep.subr.bf16.mxu0 0
          %1274 = vmatpush1.bf16.msra.mxu0 %v1257
          %1275 = vmatprep.subr.bf16.mxu0 0
          %1276 = vmatpush1.bf16.msra.mxu0 %v1258
          %1277 = vmatprep.subr.bf16.mxu0 0
          %1278 = vmatpush1.bf16.msra.mxu0 %v1259
          %1279 = vmatprep.subr.bf16.mxu0 0
          %1280 = vmatpush1.bf16.msra.mxu0 %v1260
          %1281 = vmatprep.subr.bf16.mxu0 0
          %1282 = vmatpush1.bf16.msra.mxu0 %v1261
          %1283 = vmatprep.subr.bf16.mxu0 0
          %1284 = vmatpush1.bf16.msra.mxu0 %v1262
          %1285 = vmatprep.subr.bf16.mxu0 0
          %1286 = vmatpush1.bf16.msra.mxu0 %v1263
          %1287 = vmatprep.subr.bf16.mxu0 0
          %1288 = vmatpush1.bf16.msra.mxu0 %v1264
          %1289 = vmatprep.subr.bf16.mxu0 0
          %1290 = vmatpush1.bf16.msra.mxu0 0
          %1291 = vmatprep.subr.bf16.mxu0 0
          %1292 = vmatpush1.bf16.msra.mxu0 0
          %1293 = vmatprep.subr.bf16.mxu0 0
          %1294 = vmatpush1.bf16.msra.mxu0 0
          %1295 = vmatprep.subr.bf16.mxu0 0
          %1296 = vmatpush1.bf16.msra.mxu0 0
          %1297 = vmatprep.subr.bf16.mxu0 0
          %1298 = vmatpush1.bf16.msra.mxu0 0
          %1299 = vmatprep.subr.bf16.mxu0 0
          %1300 = vmatpush1.bf16.msra.mxu0 0
          %1301 = vmatprep.subr.bf16.mxu0 0
          %1302 = vmatpush1.bf16.msra.mxu0 0
          %1303 = vmatprep.subr.bf16.mxu0 0
          %1304 = vmatpush1.bf16.msra.mxu0 0
          %1305 = vmatprep.mubr.bf16.mxu0 0
          %1306 = vmatmul.mubr.bf16.gmra.mrb[0].mxu0 %v1271
          %v1307 = vpop.f32.mrb[0].mxu0
          %v1308 = vadd.f32 0.0, %v1307
          %v1309 = vpop.f32.mrb[0].mxu0
          %v1310 = vpop.f32.mrb[0].mxu0
          %v1311 = vadd.f32 0.0, %v1310
          %v1312 = vpop.f32.mrb[0].mxu0
          %1313 = vdwg.mxu0
          %v1314 = vld [vmem:[#allocation13] sm:$0xff]
          %1316 = vset.pattern.permute.xlu0 0
          %1317 = vperm.xlu0 %1316, %v1314
          %v1318 = vpop.permute.xlu0 %1317
          %v1320 = vmul.f32 %v1308, %v1318
          %v1321 = vpack.c.bf16 %v1320, %v1320
          %v1322 = vld [vmem:[#allocation15] sm:$0xf]
          %v1323 = vld [vmem:[#allocation15 + $0x4] sm:$0xf]
          %v1324 = vld [vmem:[#allocation15 + $0x8] sm:$0xf]
          %v1325 = vld [vmem:[#allocation15 + $0xc] sm:$0xf]
          %v1326 = vld [vmem:[#allocation15 + $0x10] sm:$0xf]
          %v1327 = vld [vmem:[#allocation15 + $0x14] sm:$0xf]
          %v1328 = vld [vmem:[#allocation15 + $0x18] sm:$0xf]
          %v1329 = vld [vmem:[#allocation15 + $0x1c] sm:$0xf]
          %v1330 = vld [vmem:[#allocation15 + $0x20] sm:$0xf]
          %v1331 = vld [vmem:[#allocation15 + $0x24] sm:$0xf]
          %v1332 = vld [vmem:[#allocation15 + $0x28] sm:$0xf]
          %v1333 = vld [vmem:[#allocation15 + $0x2c] sm:$0xf]
          %v1334 = vld [vmem:[#allocation15 + $0x30] sm:$0xf]
          %v1335 = vld [vmem:[#allocation15 + $0x34] sm:$0xf]
          %v1336 = vld [vmem:[#allocation15 + $0x38] sm:$0xf]
          %v1337 = vld [vmem:[#allocation15 + $0x3c] sm:$0xf]
          %v1338 = vpack.c.bf16 %v1311, %v1311
          %v1339 = vld [vmem:[#allocation16] sm:$0xf]
          %v1340 = vld [vmem:[#allocation16 + $0x4] sm:$0xf]
          %v1341 = vld [vmem:[#allocation16 + $0x8] sm:$0xf]
          %v1342 = vld [vmem:[#allocation16 + $0xc] sm:$0xf]
          %v1343 = vld [vmem:[#allocation16 + $0x10] sm:$0xf]
          %v1344 = vld [vmem:[#allocation16 + $0x14] sm:$0xf]
          %v1345 = vld [vmem:[#allocation16 + $0x18] sm:$0xf]
          %v1346 = vld [vmem:[#allocation16 + $0x1c] sm:$0xf]
          %v1347 = vld [vmem:[#allocation16 + $0x20] sm:$0xf]
          %v1348 = vld [vmem:[#allocation16 + $0x24] sm:$0xf]
          %v1349 = vld [vmem:[#allocation16 + $0x28] sm:$0xf]
          %v1350 = vld [vmem:[#allocation16 + $0x2c] sm:$0xf]
          %v1351 = vld [vmem:[#allocation16 + $0x30] sm:$0xf]
          %v1352 = vld [vmem:[#allocation16 + $0x34] sm:$0xf]
          %v1353 = vld [vmem:[#allocation16 + $0x38] sm:$0xf]
          %v1354 = vld [vmem:[#allocation16 + $0x3c] sm:$0xf]
          %v1371 = vunpack.c.l.b16 %v1339
          %v1372 = vunpack.c.l.b16 %v1340
          %v1373 = vunpack.c.l.b16 %v1341
          %v1374 = vunpack.c.l.b16 %v1342
          %v1375 = vunpack.c.l.b16 %v1343
          %v1376 = vunpack.c.l.b16 %v1344
          %v1377 = vunpack.c.l.b16 %v1345
          %v1378 = vunpack.c.l.b16 %v1346
          %v1379 = vunpack.c.l.b16 %v1347
          %v1380 = vunpack.c.l.b16 %v1348
          %v1381 = vunpack.c.l.b16 %v1349
          %v1382 = vunpack.c.l.b16 %v1350
          %v1383 = vunpack.c.l.b16 %v1351
          %v1384 = vunpack.c.l.b16 %v1352
          %v1385 = vunpack.c.l.b16 %v1353
          %v1386 = vunpack.c.l.b16 %v1354
          %v1387 = vpack.c.b16 %v1372, %v1371
          %v1388 = vpack.c.b16 %v1374, %v1373
          %v1389 = vpack.c.b16 %v1376, %v1375
          %v1390 = vpack.c.b16 %v1378, %v1377
          %v1391 = vpack.c.b16 %v1380, %v1379
          %v1392 = vpack.c.b16 %v1382, %v1381
          %v1393 = vpack.c.b16 %v1384, %v1383
          %v1394 = vpack.c.b16 %v1386, %v1385
          %1403 = vmatprep.subr.bf16.mxu0 0
          %1404 = vmatpush1.bf16.msra.mxu0 %v1387
          %1405 = vmatprep.subr.bf16.mxu0 0
          %1406 = vmatpush1.bf16.msra.mxu0 %v1388
          %1407 = vmatprep.subr.bf16.mxu0 0
          %1408 = vmatpush1.bf16.msra.mxu0 %v1389
          %1409 = vmatprep.subr.bf16.mxu0 0
          %1410 = vmatpush1.bf16.msra.mxu0 %v1390
          %1411 = vmatprep.subr.bf16.mxu0 0
          %1412 = vmatpush1.bf16.msra.mxu0 %v1391
          %1413 = vmatprep.subr.bf16.mxu0 0
          %1414 = vmatpush1.bf16.msra.mxu0 %v1392
          %1415 = vmatprep.subr.bf16.mxu0 0
          %1416 = vmatpush1.bf16.msra.mxu0 %v1393
          %1417 = vmatprep.subr.bf16.mxu0 0
          %1418 = vmatpush1.bf16.msra.mxu0 %v1394
          %1419 = vmatprep.subr.bf16.mxu0 0
          %1420 = vmatpush1.bf16.msra.mxu0 0
          %1421 = vmatprep.subr.bf16.mxu0 0
          %1422 = vmatpush1.bf16.msra.mxu0 0
          %1423 = vmatprep.subr.bf16.mxu0 0
          %1424 = vmatpush1.bf16.msra.mxu0 0
          %1425 = vmatprep.subr.bf16.mxu0 0
          %1426 = vmatpush1.bf16.msra.mxu0 0
          %1427 = vmatprep.subr.bf16.mxu0 0
          %1428 = vmatpush1.bf16.msra.mxu0 0
          %1429 = vmatprep.subr.bf16.mxu0 0
          %1430 = vmatpush1.bf16.msra.mxu0 0
          %1431 = vmatprep.subr.bf16.mxu0 0
          %1432 = vmatpush1.bf16.msra.mxu0 0
          %1433 = vmatprep.subr.bf16.mxu0 0
          %1434 = vmatpush1.bf16.msra.mxu0 0
          %1435 = vmatprep.mubr.bf16.mxu0 0
          %1436 = vmatmul.mubr.bf16.gmra.mrb[0].mxu0 %v1338
          %v1437 = vpop.f32.mrb[0].mxu0
          %v1438 = vadd.f32 0.0, %v1437
          %v1439 = vpop.f32.mrb[0].mxu0
          %v1440 = vpop.f32.mrb[0].mxu0
          %v1441 = vpop.f32.mrb[0].mxu0
          %1442 = vdwg.mxu0
          %v1459 = vunpack.c.l.b16 %v1322
          %v1460 = vunpack.c.l.b16 %v1323
          %v1461 = vunpack.c.l.b16 %v1324
          %v1462 = vunpack.c.l.b16 %v1325
          %v1463 = vunpack.c.l.b16 %v1326
          %v1464 = vunpack.c.l.b16 %v1327
          %v1465 = vunpack.c.l.b16 %v1328
          %v1466 = vunpack.c.l.b16 %v1329
          %v1467 = vunpack.c.l.b16 %v1330
          %v1468 = vunpack.c.l.b16 %v1331
          %v1469 = vunpack.c.l.b16 %v1332
          %v1470 = vunpack.c.l.b16 %v1333
          %v1471 = vunpack.c.l.b16 %v1334
          %v1472 = vunpack.c.l.b16 %v1335
          %v1473 = vunpack.c.l.b16 %v1336
          %v1474 = vunpack.c.l.b16 %v1337
          %v1475 = vpack.c.b16 %v1460, %v1459
          %v1476 = vpack.c.b16 %v1462, %v1461
          %v1477 = vpack.c.b16 %v1464, %v1463
          %v1478 = vpack.c.b16 %v1466, %v1465
          %v1479 = vpack.c.b16 %v1468, %v1467
          %v1480 = vpack.c.b16 %v1470, %v1469
          %v1481 = vpack.c.b16 %v1472, %v1471
          %v1482 = vpack.c.b16 %v1474, %v1473
          %1491 = vmatprep.subr.bf16.mxu0 0
          %1492 = vmatpush1.bf16.msra.mxu0 %v1475
          %1493 = vmatprep.subr.bf16.mxu0 0
          %1494 = vmatpush1.bf16.msra.mxu0 %v1476
          %1495 = vmatprep.subr.bf16.mxu0 0
          %1496 = vmatpush1.bf16.msra.mxu0 %v1477
          %1497 = vmatprep.subr.bf16.mxu0 0
          %1498 = vmatpush1.bf16.msra.mxu0 %v1478
          %1499 = vmatprep.subr.bf16.mxu0 0
          %1500 = vmatpush1.bf16.msra.mxu0 %v1479
          %1501 = vmatprep.subr.bf16.mxu0 0
          %1502 = vmatpush1.bf16.msra.mxu0 %v1480
          %1503 = vmatprep.subr.bf16.mxu0 0
          %1504 = vmatpush1.bf16.msra.mxu0 %v1481
          %1505 = vmatprep.subr.bf16.mxu0 0
          %1506 = vmatpush1.bf16.msra.mxu0 %v1482
          %1507 = vmatprep.subr.bf16.mxu0 0
          %1508 = vmatpush1.bf16.msra.mxu0 0
          %1509 = vmatprep.subr.bf16.mxu0 0
          %1510 = vmatpush1.bf16.msra.mxu0 0
          %1511 = vmatprep.subr.bf16.mxu0 0
          %1512 = vmatpush1.bf16.msra.mxu0 0
          %1513 = vmatprep.subr.bf16.mxu0 0
          %1514 = vmatpush1.bf16.msra.mxu0 0
          %1515 = vmatprep.subr.bf16.mxu0 0
          %1516 = vmatpush1.bf16.msra.mxu0 0
          %1517 = vmatprep.subr.bf16.mxu0 0
          %1518 = vmatpush1.bf16.msra.mxu0 0
          %1519 = vmatprep.subr.bf16.mxu0 0
          %1520 = vmatpush1.bf16.msra.mxu0 0
          %1521 = vmatprep.subr.bf16.mxu0 0
          %1522 = vmatpush1.bf16.msra.mxu0 0
          %1523 = vmatprep.mubr.bf16.mxu0 0
          %1524 = vmatmul.mubr.bf16.gmra.mrb[0].mxu0 %v1321
          %v1525 = vpop.f32.mrb[0].mxu0
          %v1526 = vadd.f32 %v1438, %v1525
          %v1527 = vpop.f32.mrb[0].mxu0
          %v1528 = vpop.f32.mrb[0].mxu0
          %v1529 = vpop.f32.mrb[0].mxu0
          %1530 = vdwg.mxu0
          %v1531 = vld [vmem:[#allocation18] sm:$0x1]
          %v1533 = vlaneseq
          %v1534 = vshrl.u32 %v1533, 7
          %v1535 = vsub.s32 0, %v1534
          %v1536 = vrot.slane %v1531, %v1535
          %v1538 = vadd.f32 %v1526, %v1536
          %1539 = vst [vmem:[#allocation19] sm:$0xff] %v1538
        $region120: #{tpu_custom_call.1} parent=63 // pred_fallthru
          _
        // Predicated region
        $region121: #{tpu_custom_call.1} parent=63 // pred_check
          %p1540 = pneg %p291
        $region122: #{tpu_custom_call.1} parent=63 // pred_check_branch
          %1542 = sbr.rel (%p1540) target = $region124
        $region123: #{tpu_custom_call.1} parent=63 // pred_region
          %s1544 = ssub.s32 128, 128
          %1545 = vsyncadd [#allocation5], %s1544
          %s1547 = sshll.u32 [#allocation19], 4
          %s1548 = int_to_ptr.vmem [resolvable:$true] %s1547
          %1550 = dma.vmem_to_hbm [thread:$0]  %s1548, 128, %s11, [#allocation5]
        $region124: #{tpu_custom_call.1} parent=63 // pred_fallthru
          _
        // Predicated region
        $region125: #{tpu_custom_call.1} parent=63 // pred_check
          %p1551 = pneg %p291
        $region126: #{tpu_custom_call.1} parent=63 // pred_check_branch
          %1553 = sbr.rel (%p1551) target = $region128
        $region127: #{tpu_custom_call.1} parent=63 // pred_region
          %1554 = dma.done [#allocation5], 128
        $region128: #{tpu_custom_call.1} parent=63 // pred_fallthru
          _
      $region64: #{tpu_custom_call.1} parent=5 // pred_fallthru
        _
      %p1555 = scmp.le.s32.totalorder 2, %s22
      // Predicated region
      $region129: #{tpu_custom_call.1} parent=5 // pred_check
        %p1556 = pneg %p1555
      $region130: #{tpu_custom_call.1} parent=5 // pred_check_branch
        %1558 = sbr.rel (%p1556) target = $region132
      $region131: #{tpu_custom_call.1} parent=5 // pred_region
        %s1559 = ssub.s32 %s22, 2
      $region132: #{tpu_custom_call.1} parent=5 // pred_fallthru
        _
    $region6: #{tpu_custom_call.1} parent=1 // loop_footer
      %s26 = sadd.s32 1, %s22
    $region7: #{tpu_custom_call.1} parent=1 // loop_footer_branch
      %21 = sbr.rel target = $region3
    $region8: #{tpu_custom_call.1} parent=1 // loop_exit
      _
    %1560 = vsyncpa [#allocation4], 1
    %s1561 = scalar_lea.sflag [#allocation4], 1
    %1562 = vsyncpa %s1561, 1
    %1563 = vsyncpa [#allocation7], 1
    %1564 = vsyncpa [#allocation14], 1
    %1565 = vsyncpa [#allocation17], 1
    %1566 = vsyncpa [#allocation5], 1
    %s1567 = scalar_lea.sflag [#allocation5], 1
    %1568 = vsyncpa %s1567, 1

</llo_original>
